<compile_context>
chip_gen: v6e
topology: v6e:2x2x1
jax: 0.10.0
libtpu: 0.0.40
codegen_flags: <defaults>
</compile_context>

<pallas_src>
import functools

import jax
import jax.numpy as jnp
import numpy as np
from jax import lax
from jax.experimental import pallas as pl
from jax.experimental.pallas import tpu as pltpu


def _final_layer_kernel(x_ref, c_ref, wsh_ref, wsc_ref, bsh_ref, bsc_ref,
                        wlin_ref, blin_ref, o_ref, y_ref, *, eps):
    """Grid: (batch_tiles, out_feature_tiles). y_ref: VMEM scratch [TB, H] bf16."""
    # adaLN GEMMs + LayerNorm + modulate only once per row tile (j == 0); the
    # modulated activations are kept in VMEM scratch and reused for every output tile.
    @pl.when(pl.program_id(1) == 0)
    def _compute_modulated():
        x = x_ref[...]                                   # [TB, H] f32
        c = c_ref[...]                                   # [TB, H] f32

        # SiLU(c) = c * sigmoid(c); exp + approx reciprocal both land on the EUP.
        sig = pl.reciprocal(1.0 + jnp.exp(-c), approx=True)
        silu_c = (c * sig).astype(jnp.bfloat16)          # bf16 MXU operand

        # shift/scale from split weights (no [TB, 2H] intermediate), f32 accumulate.
        shift = jnp.dot(silu_c, wsh_ref[...],
                        preferred_element_type=jnp.float32) + bsh_ref[...]
        scale = jnp.dot(silu_c, wsc_ref[...],
                        preferred_element_type=jnp.float32) + bsc_ref[...]

        # LayerNorm(hidden, elementwise_affine=False, eps=1e-6) in f32.
        mu = jnp.mean(x, axis=-1, keepdims=True)
        xc = x - mu
        var = jnp.mean(xc * xc, axis=-1, keepdims=True)
        xn = xc * lax.rsqrt(var + eps)                   # rsqrt -> EUP slot

        # modulate(x, shift, scale) = x * (1 + scale) + shift ; stash as bf16.
        y_ref[...] = (xn * (1.0 + scale) + shift).astype(y_ref.dtype)

    # Final linear on the current output-feature tile (bf16 MXU, f32 accumulate).
    out = jnp.dot(y_ref[...], wlin_ref[...],
                  preferred_element_type=jnp.float32) + blin_ref[...]
    o_ref[...] = out.astype(o_ref.dtype)


def _pick_block_rows(batch):
    # MXU-aware: prefer 256-row tiles (v6e/v7x 256-wide MXU), else 128 (v5e MXU),
    # while keeping >= 2 grid steps for pipelining / megacore sharding.
    for cand in (256, 128):
        if batch % cand == 0 and batch // cand >= 2:
            return cand
    for cand in (256, 128, 64, 32, 16, 8):
        if batch % cand == 0:
            return cand
    return batch


def _pick_block_cols(out_features, max_cols=2048):
    # Full O if it fits comfortably; otherwise the largest 128-multiple divisor.
    if out_features <= max_cols:
        return out_features
    for cand in range(max_cols, 127, -128):
        if out_features % cand == 0:
            return cand
    return out_features


def _estimate_vmem_bytes(block_rows, block_cols, hidden, out_itemsize,
                         single_buffer_weights):
    wbuf = 1 if single_buffer_weights else 2
    est = 0
    est += 2 * 2 * block_rows * hidden * 4          # x, c (f32, double-buffered)
    est += wbuf * 2 * hidden * hidden * 2           # W_shift, W_scale (bf16)
    est += wbuf * 2 * hidden * 4                    # b_shift, b_scale rows (f32)
    est += 2 * hidden * block_cols * 2              # w_lin tile (bf16)
    est += 2 * block_cols * 4                       # b_lin tile (f32)
    est += 2 * block_rows * block_cols * out_itemsize  # output tile
    est += block_rows * hidden * 2                  # y scratch (bf16)
    return est


def final_layer_forward(x, c, w_ada, b_ada, w_lin, b_lin, *, eps=1e-6,
                        block_rows=None, block_cols=None,
                        out_dtype=jnp.float32, single_buffer_weights=False):
    """x: [B, H], c: [B, H], w_ada: [H, 2H], b_ada: [2H], w_lin: [H, O], b_lin: [O].

    TODO(synk): if the real caller has x=[B, T, H] with per-sample c=[B, H], hoist
    the adaLN GEMM to once per sample (outer grid over B, inner over token tiles)
    instead of flattening tokens, to avoid recomputing shift/scale per token tile.
    """
    B, H = x.shape
    assert c.shape == (B, H)
    assert w_ada.shape == (H, 2 * H) and b_ada.shape == (2 * H,)
    O = w_lin.shape[1]
    assert w_lin.shape == (H, O) and b_lin.shape == (O,)

    if block_rows is None:
        block_rows = _pick_block_rows(B)
    assert B % block_rows == 0
    if block_cols is None:
        block_cols = _pick_block_cols(O)
    assert O % block_cols == 0
    grid = (B // block_rows, O // block_cols)

    # Split adaLN weight so shift/scale are produced directly; bf16 MXU operands.
    w_shift = w_ada[:, :H].astype(jnp.bfloat16)
    w_scale = w_ada[:, H:].astype(jnp.bfloat16)
    b_shift = b_ada[:H].reshape(1, H).astype(jnp.float32)
    b_scale = b_ada[H:].reshape(1, H).astype(jnp.float32)
    w_lin_bf = w_lin.astype(jnp.bfloat16)
    b_lin2 = b_lin.reshape(1, O).astype(jnp.float32)
    x = x.astype(jnp.float32)
    c = c.astype(jnp.float32)

    # Constant-index (resident) weights/biases; optionally single-buffered on v7x.
    weight_kwargs = (
        dict(pipeline_mode=pl.Buffered(1)) if single_buffer_weights else {}
    )

    in_specs = [
        pl.BlockSpec((block_rows, H), lambda i, j: (i, 0)),                  # x
        pl.BlockSpec((block_rows, H), lambda i, j: (i, 0)),                  # c
        pl.BlockSpec((H, H), lambda i, j: (0, 0), **weight_kwargs),          # W_shift
        pl.BlockSpec((H, H), lambda i, j: (0, 0), **weight_kwargs),          # W_scale
        pl.BlockSpec((1, H), lambda i, j: (0, 0), **weight_kwargs),          # b_shift
        pl.BlockSpec((1, H), lambda i, j: (0, 0), **weight_kwargs),          # b_scale
        pl.BlockSpec((H, block_cols), lambda i, j: (0, j)),                  # w_lin
        pl.BlockSpec((1, block_cols), lambda i, j: (0, j)),                  # b_lin
    ]
    out_spec = pl.BlockSpec((block_rows, block_cols), lambda i, j: (i, j))

    # Explicit VMEM budget (v5e scoped default is 16 MiB; cap at 64 MiB for v7x).
    est = _estimate_vmem_bytes(block_rows, block_cols, H,
                               jnp.dtype(out_dtype).itemsize, single_buffer_weights)
    vmem_limit = int(min(max(2 * est + (8 << 20), 32 << 20), 64 << 20))

    kernel = functools.partial(_final_layer_kernel, eps=eps)

    return pl.pallas_call(
        kernel,
        out_shape=jax.ShapeDtypeStruct((B, O), out_dtype),
        grid=grid,
        in_specs=in_specs,
        out_specs=out_spec,
        scratch_shapes=[pltpu.VMEM((block_rows, H), jnp.bfloat16)],  # modulated y
        compiler_params=pltpu.CompilerParams(
            dimension_semantics=("parallel", "arbitrary"),
            vmem_limit_bytes=vmem_limit),
    )(x, c, w_shift, w_scale, b_shift, b_scale, w_lin_bf, b_lin2)


def final_layer_reference_f32(x, c, w_ada, b_ada, w_lin, b_lin, eps=1e-6):
    """Pure-f32 JAX replica of the PyTorch forward (semantic reference)."""
    H = x.shape[-1]
    silu_c = c * jax.nn.sigmoid(c)
    mod = silu_c @ w_ada + b_ada
    shift, scale = mod[:, :H], mod[:, H:]
    mu = jnp.mean(x, axis=-1, keepdims=True)
    var = jnp.mean((x - mu) ** 2, axis=-1, keepdims=True)
    xn = (x - mu) / jnp.sqrt(var + eps)
    y = xn * (1.0 + scale) + shift
    return y @ w_lin + b_lin


def final_layer_reference_bf16(x, c, w_ada, b_ada, w_lin, b_lin, eps=1e-6):
    """Mirrors the kernel's dtype strategy (bf16 GEMM operands, f32 accumulation)."""
    H = x.shape[-1]
    silu_c = (c * jax.nn.sigmoid(c)).astype(jnp.bfloat16)
    w_shift = w_ada[:, :H].astype(jnp.bfloat16)
    w_scale = w_ada[:, H:].astype(jnp.bfloat16)
    shift = jnp.dot(silu_c, w_shift, preferred_element_type=jnp.float32) + b_ada[:H]
    scale = jnp.dot(silu_c, w_scale, preferred_element_type=jnp.float32) + b_ada[H:]
    mu = jnp.mean(x, axis=-1, keepdims=True)
    var = jnp.mean((x - mu) ** 2, axis=-1, keepdims=True)
    xn = (x - mu) * lax.rsqrt(var + eps)
    y = (xn * (1.0 + scale) + shift).astype(jnp.bfloat16)
    return jnp.dot(y, w_lin.astype(jnp.bfloat16),
                   preferred_element_type=jnp.float32) + b_lin


if __name__ == "__main__":
    # (8,128)-aligned demo shapes: hidden=128, max_length*out_channels=128.
    # B=512 with the default 256-row tile -> grid (2, 1): >= 2 (even) grid steps,
    # MXU-sized M tiles, still a tiny problem (each tensor is only 256 KiB).
    B = 512
    hidden_size = 128
    max_length = 8
    out_channels = 16
    O = max_length * out_channels

    key = jax.random.PRNGKey(0)
    kx, kc, kwa, kba, kwl, kbl = jax.random.split(key, 6)

    x = jax.random.normal(kx, (B, hidden_size), dtype=jnp.float32)
    c = jax.random.normal(kc, (B, hidden_size), dtype=jnp.float32)

    # Deterministic synthetic parameters (nn.Linear-like scale), stored as [in, out].
    w_ada = jax.random.normal(kwa, (hidden_size, 2 * hidden_size), dtype=jnp.float32) \
        * (1.0 / np.sqrt(hidden_size))
    b_ada = jax.random.normal(kba, (2 * hidden_size,), dtype=jnp.float32) * 0.01
    w_lin = jax.random.normal(kwl, (hidden_size, O), dtype=jnp.float32) \
        * (1.0 / np.sqrt(hidden_size))
    b_lin = jax.random.normal(kbl, (O,), dtype=jnp.float32) * 0.01

    out = final_layer_forward(x, c, w_ada, b_ada, w_lin, b_lin)
    out = jax.block_until_ready(out)
    out_np = np.asarray(out)

    # Tight check against a reference that mirrors the kernel's bf16 GEMM strategy.
    ref_bf16 = np.asarray(final_layer_reference_bf16(x, c, w_ada, b_ada, w_lin, b_lin))
    np.testing.assert_allclose(out_np, ref_bf16, rtol=3e-2, atol=3e-2)

    # Looser semantic check against the full-f32 PyTorch-equivalent reference.
    ref_f32 = np.asarray(final_layer_reference_f32(x, c, w_ada, b_ada, w_lin, b_lin))
    np.testing.assert_allclose(out_np, ref_f32, rtol=5e-2, atol=5e-2)

    print("KERNEL_OK")
</pallas_src>

<mosaic_0001>
module attributes {stable_mosaic.version = 11 : i64} {
  func.func @_final_layer_kernel(%arg0: i32, %arg1: i32, %arg2: memref<256x128xf32, #tpu.memory_space<vmem>>, %arg3: memref<256x128xf32, #tpu.memory_space<vmem>>, %arg4: memref<128x128xbf16, #tpu.memory_space<vmem>>, %arg5: memref<128x128xbf16, #tpu.memory_space<vmem>>, %arg6: memref<1x128xf32, #tpu.memory_space<vmem>>, %arg7: memref<1x128xf32, #tpu.memory_space<vmem>>, %arg8: memref<128x128xbf16, #tpu.memory_space<vmem>>, %arg9: memref<1x128xf32, #tpu.memory_space<vmem>>, %arg10: memref<256x128xf32, #tpu.memory_space<vmem>>, %arg11: memref<256x128xbf16, #tpu.memory_space<vmem>>) attributes {dimension_semantics = [#tpu.dimension_semantics<parallel>, #tpu.dimension_semantics<arbitrary>], iteration_bounds = array<i64: 2, 1>, scalar_prefetch = 0 : i64, scratch_operands = 1 : i64, tpu.core_type = #tpu.core_type<tc>, window_params = [{transform_indices = @transform_0, window_bounds = array<i64: 256, 128>}, {transform_indices = @transform_1, window_bounds = array<i64: 256, 128>}, {pipeline_mode = #tpu.pipeline_mode<synchronous>, transform_indices = @transform_2, window_bounds = array<i64: 128, 128>}, {pipeline_mode = #tpu.pipeline_mode<synchronous>, transform_indices = @transform_3, window_bounds = array<i64: 128, 128>}, {pipeline_mode = #tpu.pipeline_mode<synchronous>, transform_indices = @transform_4, window_bounds = array<i64: 1, 128>}, {pipeline_mode = #tpu.pipeline_mode<synchronous>, transform_indices = @transform_5, window_bounds = array<i64: 1, 128>}, {transform_indices = @transform_6, window_bounds = array<i64: 128, 128>}, {transform_indices = @transform_7, window_bounds = array<i64: 1, 128>}, {transform_indices = @transform_8, window_bounds = array<i64: 256, 128>}]} {
    %c0_i32 = arith.constant 0 : i32
    %0 = arith.cmpi eq, %arg1, %c0_i32 : i32
    %1 = arith.extui %0 : i1 to i32
    %c0_i32_0 = arith.constant 0 : i32
    %2 = arith.cmpi ne, %1, %c0_i32_0 : i32
    scf.if %2 {
      %c0_8 = arith.constant 0 : index
      %c0_9 = arith.constant 0 : index
      %10 = vector.load %arg2[%c0_8, %c0_9] : memref<256x128xf32, #tpu.memory_space<vmem>>, vector<256x128xf32>
      %c0_10 = arith.constant 0 : index
      %c0_11 = arith.constant 0 : index
      %11 = vector.load %arg3[%c0_10, %c0_11] : memref<256x128xf32, #tpu.memory_space<vmem>>, vector<256x128xf32>
      %cst_12 = arith.constant 0.000000e+00 : f32
      %12 = vector.broadcast %cst_12 : f32 to vector<256x128xf32>
      %13 = arith.subf %12, %11 : vector<256x128xf32>
      %14 = math.exp %13 : vector<256x128xf32>
      %cst_13 = arith.constant 1.000000e+00 : f32
      %15 = vector.broadcast %cst_13 : f32 to vector<256x128xf32>
      %16 = arith.addf %15, %14 : vector<256x128xf32>
      %17 = tpu.reciprocal %16 {approx = true} : vector<256x128xf32> -> vector<256x128xf32>
      %18 = arith.mulf %11, %17 : vector<256x128xf32>
      %19 = arith.truncf %18 : vector<256x128xf32> to vector<256x128xbf16>
      %c0_14 = arith.constant 0 : index
      %c0_15 = arith.constant 0 : index
      %20 = vector.load %arg4[%c0_14, %c0_15] : memref<128x128xbf16, #tpu.memory_space<vmem>>, vector<128x128xbf16>
      %cst_16 = arith.constant dense<0.000000e+00> : vector<256x128xf32>
      %21 = tpu.matmul %19, %20, %cst_16 {dimension_numbers = #tpu.dot_dimension_numbers<[1], [0], [0], [1], [0, 0, 1, 1], [], []>} : vector<256x128xbf16>, vector<128x128xbf16>, vector<256x128xf32> -> vector<256x128xf32>
      %c0_17 = arith.constant 0 : index
      %c0_18 = arith.constant 0 : index
      %22 = vector.load %arg6[%c0_17, %c0_18] : memref<1x128xf32, #tpu.memory_space<vmem>>, vector<1x128xf32>
      %23 = vector.broadcast %22 : vector<1x128xf32> to vector<256x128xf32>
      %24 = arith.addf %21, %23 : vector<256x128xf32>
      %c0_19 = arith.constant 0 : index
      %c0_20 = arith.constant 0 : index
      %25 = vector.load %arg5[%c0_19, %c0_20] : memref<128x128xbf16, #tpu.memory_space<vmem>>, vector<128x128xbf16>
      %cst_21 = arith.constant dense<0.000000e+00> : vector<256x128xf32>
      %26 = tpu.matmul %19, %25, %cst_21 {dimension_numbers = #tpu.dot_dimension_numbers<[1], [0], [0], [1], [0, 0, 1, 1], [], []>} : vector<256x128xbf16>, vector<128x128xbf16>, vector<256x128xf32> -> vector<256x128xf32>
      %c0_22 = arith.constant 0 : index
      %c0_23 = arith.constant 0 : index
      %27 = vector.load %arg7[%c0_22, %c0_23] : memref<1x128xf32, #tpu.memory_space<vmem>>, vector<1x128xf32>
      %28 = vector.broadcast %27 : vector<1x128xf32> to vector<256x128xf32>
      %29 = arith.addf %26, %28 : vector<256x128xf32>
      %cst_24 = arith.constant dense<0.000000e+00> : vector<256xf32>
      %30 = vector.multi_reduction <add>, %10, %cst_24 [1] : vector<256x128xf32> to vector<256xf32>
      %31 = vector.shape_cast %30 : vector<256xf32> to vector<256x1xf32>
      %cst_25 = arith.constant 1.280000e+02 : f32
      %32 = vector.broadcast %cst_25 : f32 to vector<256x1xf32>
      %33 = arith.divf %31, %32 : vector<256x1xf32>
      %34 = vector.broadcast %33 : vector<256x1xf32> to vector<256x128xf32>
      %35 = arith.subf %10, %34 : vector<256x128xf32>
      %36 = arith.mulf %35, %35 : vector<256x128xf32>
      %cst_26 = arith.constant dense<0.000000e+00> : vector<256xf32>
      %37 = vector.multi_reduction <add>, %36, %cst_26 [1] : vector<256x128xf32> to vector<256xf32>
      %38 = vector.shape_cast %37 : vector<256xf32> to vector<256x1xf32>
      %cst_27 = arith.constant 1.280000e+02 : f32
      %39 = vector.broadcast %cst_27 : f32 to vector<256x1xf32>
      %40 = arith.divf %38, %39 : vector<256x1xf32>
      %cst_28 = arith.constant 9.99999997E-7 : f32
      %41 = vector.broadcast %cst_28 : f32 to vector<256x1xf32>
      %42 = arith.addf %40, %41 : vector<256x1xf32>
      %43 = math.rsqrt %42 : vector<256x1xf32>
      %44 = vector.broadcast %43 : vector<256x1xf32> to vector<256x128xf32>
      %45 = arith.mulf %35, %44 : vector<256x128xf32>
      %cst_29 = arith.constant 1.000000e+00 : f32
      %46 = vector.broadcast %cst_29 : f32 to vector<256x128xf32>
      %47 = arith.addf %46, %29 : vector<256x128xf32>
      %48 = arith.mulf %45, %47 : vector<256x128xf32>
      %49 = arith.addf %48, %24 : vector<256x128xf32>
      %50 = arith.truncf %49 : vector<256x128xf32> to vector<256x128xbf16>
      %c0_30 = arith.constant 0 : index
      %c0_31 = arith.constant 0 : index
      %51 = vector.load %arg11[%c0_30, %c0_31] : memref<256x128xbf16, #tpu.memory_space<vmem>>, vector<256x128xbf16>
      tpu.vector_store %arg11[%c0_30, %c0_31], %50 {strides = array<i32>} : memref<256x128xbf16, #tpu.memory_space<vmem>>, vector<256x128xbf16>,
    } else {
    }
    %c0 = arith.constant 0 : index
    %c0_1 = arith.constant 0 : index
    %3 = vector.load %arg11[%c0, %c0_1] : memref<256x128xbf16, #tpu.memory_space<vmem>>, vector<256x128xbf16>
    %c0_2 = arith.constant 0 : index
    %c0_3 = arith.constant 0 : index
    %4 = vector.load %arg8[%c0_2, %c0_3] : memref<128x128xbf16, #tpu.memory_space<vmem>>, vector<128x128xbf16>
    %cst = arith.constant dense<0.000000e+00> : vector<256x128xf32>
    %5 = tpu.matmul %3, %4, %cst {dimension_numbers = #tpu.dot_dimension_numbers<[1], [0], [0], [1], [0, 0, 1, 1], [], []>} : vector<256x128xbf16>, vector<128x128xbf16>, vector<256x128xf32> -> vector<256x128xf32>
    %c0_4 = arith.constant 0 : index
    %c0_5 = arith.constant 0 : index
    %6 = vector.load %arg9[%c0_4, %c0_5] : memref<1x128xf32, #tpu.memory_space<vmem>>, vector<1x128xf32>
    %7 = vector.broadcast %6 : vector<1x128xf32> to vector<256x128xf32>
    %8 = arith.addf %5, %7 : vector<256x128xf32>
    %c0_6 = arith.constant 0 : index
    %c0_7 = arith.constant 0 : index
    %9 = vector.load %arg10[%c0_6, %c0_7] : memref<256x128xf32, #tpu.memory_space<vmem>>, vector<256x128xf32>
    tpu.vector_store %arg10[%c0_6, %c0_7], %8 {strides = array<i32>} : memref<256x128xf32, #tpu.memory_space<vmem>>, vector<256x128xf32>,
    return
  }
  func.func @transform_0(%arg0: i32, %arg1: i32) -> (i32, i32) {
    %c0_i32 = arith.constant 0 : i32
    %c0_i32_0 = arith.constant 0 : i32
    return %arg0, %c0_i32 : i32, i32
  }
  func.func @transform_1(%arg0: i32, %arg1: i32) -> (i32, i32) {
    %c0_i32 = arith.constant 0 : i32
    %c0_i32_0 = arith.constant 0 : i32
    return %arg0, %c0_i32 : i32, i32
  }
  func.func @transform_2(%arg0: i32, %arg1: i32) -> (i32, i32) {
    %c0_i32 = arith.constant 0 : i32
    %c0_i32_0 = arith.constant 0 : i32
    %c0_i32_1 = arith.constant 0 : i32
    return %c0_i32, %c0_i32_0 : i32, i32
  }
  func.func @transform_3(%arg0: i32, %arg1: i32) -> (i32, i32) {
    %c0_i32 = arith.constant 0 : i32
    %c0_i32_0 = arith.constant 0 : i32
    %c0_i32_1 = arith.constant 0 : i32
    return %c0_i32, %c0_i32_0 : i32, i32
  }
  func.func @transform_4(%arg0: i32, %arg1: i32) -> (i32, i32) {
    %c0_i32 = arith.constant 0 : i32
    %c0_i32_0 = arith.constant 0 : i32
    %c0_i32_1 = arith.constant 0 : i32
    return %c0_i32, %c0_i32_0 : i32, i32
  }
  func.func @transform_5(%arg0: i32, %arg1: i32) -> (i32, i32) {
    %c0_i32 = arith.constant 0 : i32
    %c0_i32_0 = arith.constant 0 : i32
    %c0_i32_1 = arith.constant 0 : i32
    return %c0_i32, %c0_i32_0 : i32, i32
  }
  func.func @transform_6(%arg0: i32, %arg1: i32) -> (i32, i32) {
    %c0_i32 = arith.constant 0 : i32
    %c0_i32_0 = arith.constant 0 : i32
    return %c0_i32, %arg1 : i32, i32
  }
  func.func @transform_7(%arg0: i32, %arg1: i32) -> (i32, i32) {
    %c0_i32 = arith.constant 0 : i32
    %c0_i32_0 = arith.constant 0 : i32
    return %c0_i32, %arg1 : i32, i32
  }
  func.func @transform_8(%arg0: i32, %arg1: i32) -> (i32, i32) {
    %c0_i32 = arith.constant 0 : i32
    return %arg0, %arg1 : i32, i32
  }
}

</mosaic_0001>

<llo_original>
// kernel: tpu_custom_call.1
$region0: #{tpu_custom_call.1}
  #allocation0 [shape = 'u32[]', space=smem, size = 0x4, offset = 0x4, fixed_abs, tag = 'smem constant byte address 0x4 - core index']
  #allocation1 [shape = 'u32[144,128]{1,0:T(1,128)}', space=vmem, size = 0x12000, scoped, tag = 'internal scratch']
  #allocation2 [shape = 'bf16[256,128]{1,0:T(8,128)(2,1)}', space=vmem, size = 0x10000, scoped, tag = 'scratch operand']
  %s0 = inlined_call_operand.hbm [shape: f32[512,128], index: 0, kind: input, shape index: {}]
  %s1 = inlined_call_operand.hbm [shape: f32[512,128], index: 1, kind: input, shape index: {}]
  %s2 = inlined_call_operand.hbm [shape: bf16[128,128], index: 2, kind: input, shape index: {}]
  %s3 = inlined_call_operand.hbm [shape: bf16[128,128], index: 3, kind: input, shape index: {}]
  %s4 = inlined_call_operand.vmem [shape: f32[1,128], index: 4, kind: input, shape index: {}]
  %s5 = inlined_call_operand.vmem [shape: f32[1,128], index: 5, kind: input, shape index: {}]
  %s6 = inlined_call_operand.hbm [shape: bf16[128,128], index: 6, kind: input, shape index: {}]
  %s7 = inlined_call_operand.vmem [shape: f32[1,128], index: 7, kind: input, shape index: {}]
  %s8 = inlined_call_operand.hbm [shape: f32[512,128], index: 8, kind: output, shape index: {}]
  %s9 = sld [smem:[#allocation0]]
  $region89: #{tpu_custom_call.1} parent=0
    _
  %s11 = ssub.s32 1, %s9
  %s12 = scalar_select 0, %s11, %s9
  $region1: #{tpu_custom_call.1} parent=0
    #allocation3 [shape = 'u8[262144]{0}', space=vmem, size = 0x40000, scoped, tag = 'input window, operand 0']
    #allocation4 [shape = 's32[2]{0}', space=sflag, size = 0x8, scoped, tag = 'scoped memory for tpu_custom_call.1']
    #allocation5 [shape = 's32[2]{0}', space=sflag, size = 0x8, scoped, tag = 'scoped memory for tpu_custom_call.1']
    #allocation6 [shape = 'u8[262144]{0}', space=vmem, size = 0x40000, scoped, tag = 'input window, operand 1']
    #allocation7 [shape = 's32[2]{0}', space=sflag, size = 0x8, scoped, tag = 'scoped memory for tpu_custom_call.1']
    #allocation8 [shape = 'u8[32768]{0}', space=vmem, size = 0x8000, scoped, tag = 'input window, operand 2, single buffered']
    #allocation9 [shape = 'u8[32768]{0}', space=vmem, size = 0x8000, scoped, tag = 'input window, operand 3, single buffered']
    #allocation10 [shape = 's32[1]{0}', space=sflag, size = 0x4, scoped, tag = 'scoped memory for tpu_custom_call.1']
    #allocation11 [shape = 'u8[32768]{0}', space=vmem, size = 0x8000, scoped, tag = 'input window, operand 6, single buffered']
    #allocation12 [shape = 'u8[262144]{0}', space=vmem, size = 0x40000, scoped, tag = 'output window, operand 0']
    %13 = vsyncpa [#allocation4], 0
    %s14 = scalar_lea.sflag [#allocation4], 1
    %15 = vsyncpa %s14, 0
    %16 = vsyncpa [#allocation7], 0
    %s17 = scalar_lea.sflag [#allocation7], 1
    %18 = vsyncpa %s17, 0
    %19 = vsyncpa [#allocation10], 0
    %20 = vsyncpa [#allocation5], 0
    %s21 = scalar_lea.sflag [#allocation5], 1
    %22 = vsyncpa %s21, 0
    loop: start=0, step=1, limit=4
    $region2: #{tpu_custom_call.1} parent=1 // loop_pre_header
      _
    $region3: #{tpu_custom_call.1} parent=1 // loop_header
      %s24 = sphi 0, %s28
      %p25 = scmp.ge.s32.totalorder %s24, 4
      %s31 = sphi 0, %s43
      %s32 = sphi 0, %s39
      %s33 = sphi 0, %s31
      %s34 = sphi 0, %s32
      %s35 = sphi 0, %s33
      %s36 = sphi 0, %s34
      %s46 = sphi 0, %s48
      %s49 = sphi 0, %s46
      %s50 = sphi 0, %s49
      %s66 = sphi 0, %s50
      %s72 = sphi 0, %s74
      %s75 = sphi 0, %s72
      %s76 = sphi 0, %s75
      %s92 = sphi 0, %s76
      %s96 = sphi 0, %s96
      %s98 = sphi 0, %s96
      %s99 = sphi 0, %s98
      %s113 = sphi 0, %s99
      %s117 = sphi 0, %s117
      %s119 = sphi 0, %s117
      %s120 = sphi 0, %s119
      %s134 = sphi 0, %s120
      %s138 = sphi 0, %s138
      %s140 = sphi 0, %s138
      %s141 = sphi 0, %s140
      %s155 = sphi 0, %s141
      %s159 = sphi 0, %s159
      %s161 = sphi 0, %s159
      %s162 = sphi 0, %s161
      %s176 = sphi 0, %s162
      %s182 = sphi 0, %s184
      %s185 = sphi 0, %s182
      %s186 = sphi 0, %s185
      %s202 = sphi 0, %s186
      %s208 = sphi 0, %s210
      %s211 = sphi 0, %s208
      %s212 = sphi 0, %s211
      %s228 = sphi 0, %s212
      %s236 = sphi 0, %s238
      %s239 = sphi 0, %s236
      %s240 = sphi 0, %s239
      %s256 = sphi 0, %s240
    $region4: #{tpu_custom_call.1} parent=1 // loop_header_branch
      %27 = sbr.rel (%p25) target = $region8
    $region5: #{tpu_custom_call.1} parent=1 // loop_body
      %s29 = ssub.s32 %s24, 1
      %s30 = ssub.s32 %s24, 2
      %s37 = sadd.s32 1, %s32
      %p38 = scmp.ge.s32.totalorder %s37, 1
      %s39 = scalar_select %p38, 0, %s37
      %s40 = sadd.s32 1, %s31
      %s41 = scalar_select %p38, %s40, %s31
      %p42 = scmp.ge.s32.totalorder %s41, 2
      %s43 = scalar_select %p42, 0, %s41
      %s44 = ssub.s32 %s31, %s43
      %p45 = scmp.eq.s32.totalorder %s44, 0
      %s47 = sadd.s32 %s46, 1
      %s48 = scalar_select %p45, %s46, %s47
      %p51 = pneg %p45
      %p52 = scmp.eq.s32.totalorder %s24, 1
      %p53 = por %p51, %p52
      %p54 = scmp.ne.s32.totalorder %s46, %s49
      %p55 = scmp.eq.s32.totalorder %s24, 0
      %p56 = por %p54, %p55
      %p57 = scmp.ne.s32.totalorder %s46, %s49
      %p58 = scmp.eq.s32.totalorder %s29, 1
      %p59 = por %p57, %p58
      %p60 = scmp.ne.s32.totalorder %s49, %s50
      %p61 = scmp.eq.s32.totalorder %s29, 0
      %p62 = por %p60, %p61
      %p63 = scmp.ne.s32.totalorder %s49, %s50
      %p64 = scmp.eq.s32.totalorder %s30, 1
      %p65 = por %p63, %p64
      %p67 = scmp.ne.s32.totalorder %s50, %s66
      %p68 = scmp.eq.s32.totalorder %s30, 0
      %p69 = por %p67, %p68
      %s70 = ssub.s32 %s31, %s43
      %p71 = scmp.eq.s32.totalorder %s70, 0
      %s73 = sadd.s32 %s72, 1
      %s74 = scalar_select %p71, %s72, %s73
      %p77 = pneg %p71
      %p78 = scmp.eq.s32.totalorder %s24, 1
      %p79 = por %p77, %p78
      %p80 = scmp.ne.s32.totalorder %s72, %s75
      %p81 = scmp.eq.s32.totalorder %s24, 0
      %p82 = por %p80, %p81
      %p83 = scmp.ne.s32.totalorder %s72, %s75
      %p84 = scmp.eq.s32.totalorder %s29, 1
      %p85 = por %p83, %p84
      %p86 = scmp.ne.s32.totalorder %s75, %s76
      %p87 = scmp.eq.s32.totalorder %s29, 0
      %p88 = por %p86, %p87
      %p89 = scmp.ne.s32.totalorder %s75, %s76
      %p90 = scmp.eq.s32.totalorder %s30, 1
      %p91 = por %p89, %p90
      %p93 = scmp.ne.s32.totalorder %s76, %s92
      %p94 = scmp.eq.s32.totalorder %s30, 0
      %p95 = por %p93, %p94
      %s97 = sadd.s32 %s96, 1
      %p100 = scmp.eq.s32.totalorder %s24, 1
      %p101 = scmp.ne.s32.totalorder %s96, %s98
      %p102 = scmp.eq.s32.totalorder %s24, 0
      %p103 = por %p101, %p102
      %p104 = scmp.ne.s32.totalorder %s96, %s98
      %p105 = scmp.eq.s32.totalorder %s29, 1
      %p106 = por %p104, %p105
      %p107 = scmp.ne.s32.totalorder %s98, %s99
      %p108 = scmp.eq.s32.totalorder %s29, 0
      %p109 = por %p107, %p108
      %p110 = scmp.ne.s32.totalorder %s98, %s99
      %p111 = scmp.eq.s32.totalorder %s30, 1
      %p112 = por %p110, %p111
      %p114 = scmp.ne.s32.totalorder %s99, %s113
      %p115 = scmp.eq.s32.totalorder %s30, 0
      %p116 = por %p114, %p115
      %s118 = sadd.s32 %s117, 1
      %p121 = scmp.eq.s32.totalorder %s24, 1
      %p122 = scmp.ne.s32.totalorder %s117, %s119
      %p123 = scmp.eq.s32.totalorder %s24, 0
      %p124 = por %p122, %p123
      %p125 = scmp.ne.s32.totalorder %s117, %s119
      %p126 = scmp.eq.s32.totalorder %s29, 1
      %p127 = por %p125, %p126
      %p128 = scmp.ne.s32.totalorder %s119, %s120
      %p129 = scmp.eq.s32.totalorder %s29, 0
      %p130 = por %p128, %p129
      %p131 = scmp.ne.s32.totalorder %s119, %s120
      %p132 = scmp.eq.s32.totalorder %s30, 1
      %p133 = por %p131, %p132
      %p135 = scmp.ne.s32.totalorder %s120, %s134
      %p136 = scmp.eq.s32.totalorder %s30, 0
      %p137 = por %p135, %p136
      %s139 = sadd.s32 %s138, 1
      %p142 = scmp.eq.s32.totalorder %s24, 1
      %p143 = scmp.ne.s32.totalorder %s138, %s140
      %p144 = scmp.eq.s32.totalorder %s24, 0
      %p145 = por %p143, %p144
      %p146 = scmp.ne.s32.totalorder %s138, %s140
      %p147 = scmp.eq.s32.totalorder %s29, 1
      %p148 = por %p146, %p147
      %p149 = scmp.ne.s32.totalorder %s140, %s141
      %p150 = scmp.eq.s32.totalorder %s29, 0
      %p151 = por %p149, %p150
      %p152 = scmp.ne.s32.totalorder %s140, %s141
      %p153 = scmp.eq.s32.totalorder %s30, 1
      %p154 = por %p152, %p153
      %p156 = scmp.ne.s32.totalorder %s141, %s155
      %p157 = scmp.eq.s32.totalorder %s30, 0
      %p158 = por %p156, %p157
      %s160 = sadd.s32 %s159, 1
      %p163 = scmp.eq.s32.totalorder %s24, 1
      %p164 = scmp.ne.s32.totalorder %s159, %s161
      %p165 = scmp.eq.s32.totalorder %s24, 0
      %p166 = por %p164, %p165
      %p167 = scmp.ne.s32.totalorder %s159, %s161
      %p168 = scmp.eq.s32.totalorder %s29, 1
      %p169 = por %p167, %p168
      %p170 = scmp.ne.s32.totalorder %s161, %s162
      %p171 = scmp.eq.s32.totalorder %s29, 0
      %p172 = por %p170, %p171
      %p173 = scmp.ne.s32.totalorder %s161, %s162
      %p174 = scmp.eq.s32.totalorder %s30, 1
      %p175 = por %p173, %p174
      %p177 = scmp.ne.s32.totalorder %s162, %s176
      %p178 = scmp.eq.s32.totalorder %s30, 0
      %p179 = por %p177, %p178
      %s180 = ssub.s32 %s32, %s39
      %p181 = scmp.eq.s32.totalorder %s180, 0
      %s183 = sadd.s32 %s182, 1
      %s184 = scalar_select %p181, %s182, %s183
      %p187 = pneg %p181
      %p188 = scmp.eq.s32.totalorder %s24, 1
      %p189 = por %p187, %p188
      %p190 = scmp.ne.s32.totalorder %s182, %s185
      %p191 = scmp.eq.s32.totalorder %s24, 0
      %p192 = por %p190, %p191
      %p193 = scmp.ne.s32.totalorder %s182, %s185
      %p194 = scmp.eq.s32.totalorder %s29, 1
      %p195 = por %p193, %p194
      %p196 = scmp.ne.s32.totalorder %s185, %s186
      %p197 = scmp.eq.s32.totalorder %s29, 0
      %p198 = por %p196, %p197
      %p199 = scmp.ne.s32.totalorder %s185, %s186
      %p200 = scmp.eq.s32.totalorder %s30, 1
      %p201 = por %p199, %p200
      %p203 = scmp.ne.s32.totalorder %s186, %s202
      %p204 = scmp.eq.s32.totalorder %s30, 0
      %p205 = por %p203, %p204
      %s206 = ssub.s32 %s32, %s39
      %p207 = scmp.eq.s32.totalorder %s206, 0
      %s209 = sadd.s32 %s208, 1
      %s210 = scalar_select %p207, %s208, %s209
      %p213 = pneg %p207
      %p214 = scmp.eq.s32.totalorder %s24, 1
      %p215 = por %p213, %p214
      %p216 = scmp.ne.s32.totalorder %s208, %s211
      %p217 = scmp.eq.s32.totalorder %s24, 0
      %p218 = por %p216, %p217
      %p219 = scmp.ne.s32.totalorder %s208, %s211
      %p220 = scmp.eq.s32.totalorder %s29, 1
      %p221 = por %p219, %p220
      %p222 = scmp.ne.s32.totalorder %s211, %s212
      %p223 = scmp.eq.s32.totalorder %s29, 0
      %p224 = por %p222, %p223
      %p225 = scmp.ne.s32.totalorder %s211, %s212
      %p226 = scmp.eq.s32.totalorder %s30, 1
      %p227 = por %p225, %p226
      %p229 = scmp.ne.s32.totalorder %s212, %s228
      %p230 = scmp.eq.s32.totalorder %s30, 0
      %p231 = por %p229, %p230
      %s232 = ssub.s32 %s31, %s43
      %s233 = ssub.s32 %s32, %s39
      %s234 = sor.u32 %s232, %s233
      %p235 = scmp.eq.s32.totalorder %s234, 0
      %s237 = sadd.s32 %s236, 1
      %s238 = scalar_select %p235, %s236, %s237
      %p241 = pneg %p235
      %p242 = scmp.eq.s32.totalorder %s24, 1
      %p243 = por %p241, %p242
      %p244 = scmp.ne.s32.totalorder %s236, %s239
      %p245 = scmp.eq.s32.totalorder %s24, 0
      %p246 = por %p244, %p245
      %p247 = scmp.ne.s32.totalorder %s236, %s239
      %p248 = scmp.eq.s32.totalorder %s29, 1
      %p249 = por %p247, %p248
      %p250 = scmp.ne.s32.totalorder %s239, %s240
      %p251 = scmp.eq.s32.totalorder %s29, 0
      %p252 = por %p250, %p251
      %p253 = scmp.ne.s32.totalorder %s239, %s240
      %p254 = scmp.eq.s32.totalorder %s30, 1
      %p255 = por %p253, %p254
      %p257 = scmp.ne.s32.totalorder %s240, %s256
      %p258 = scmp.eq.s32.totalorder %s30, 0
      %p259 = por %p257, %p258
      %p260 = scmp.le.s32.totalorder 1, %s24
      %p261 = scmp.lt.s32.totalorder %s24, 3
      %p262 = pnand %p260, %p261
      %p263 = pneg %p262
      // Predicated region
      $region9: #{tpu_custom_call.1} parent=5 // pred_check
        _
      $region10: #{tpu_custom_call.1} parent=5 // pred_check_branch
        %265 = sbr.rel (%p262) target = $region12
      $region11: #{tpu_custom_call.1} parent=5 // pred_region
        %s266 = ssub.s32 %s24, 1
        // Predicated region
        $region13: #{tpu_custom_call.1} parent=11 // pred_check
          %p267 = pneg %p109
        $region14: #{tpu_custom_call.1} parent=11 // pred_check_branch
          %269 = sbr.rel (%p267) target = $region16
        $region15: #{tpu_custom_call.1} parent=11 // pred_region
          %s271 = ssub.s32 1024, 1024
          %272 = vsyncadd [#allocation7], %s271
          %s273 = sshll.u32 [#allocation8], 4
          %s274 = int_to_ptr.vmem [resolvable:$true] %s273
          %279 = dma.hbm_to_vmem [thread:$0]  %s2, 1024, %s274, [#allocation7], 64, 64, 4
        $region16: #{tpu_custom_call.1} parent=11 // pred_fallthru
          _
        // Predicated region
        $region17: #{tpu_custom_call.1} parent=11 // pred_check
          %p280 = pneg %p130
        $region18: #{tpu_custom_call.1} parent=11 // pred_check_branch
          %282 = sbr.rel (%p280) target = $region20
        $region19: #{tpu_custom_call.1} parent=11 // pred_region
          %s284 = ssub.s32 1024, 1024
          %285 = vsyncadd [#allocation10], %s284
          %s286 = sshll.u32 [#allocation9], 4
          %s287 = int_to_ptr.vmem [resolvable:$true] %s286
          %292 = dma.hbm_to_vmem [thread:$0]  %s3, 1024, %s287, [#allocation10], 64, 64, 4
        $region20: #{tpu_custom_call.1} parent=11 // pred_fallthru
          _
        // Predicated region
        $region21: #{tpu_custom_call.1} parent=11 // pred_check
          %p293 = pneg %p151
        $region22: #{tpu_custom_call.1} parent=11 // pred_check_branch
          %295 = sbr.rel (%p293) target = $region24
        $region23: #{tpu_custom_call.1} parent=11 // pred_region
          _
        $region24: #{tpu_custom_call.1} parent=11 // pred_fallthru
          _
        // Predicated region
        $region25: #{tpu_custom_call.1} parent=11 // pred_check
          %p296 = pneg %p172
        $region26: #{tpu_custom_call.1} parent=11 // pred_check_branch
          %298 = sbr.rel (%p296) target = $region28
        $region27: #{tpu_custom_call.1} parent=11 // pred_region
          _
        $region28: #{tpu_custom_call.1} parent=11 // pred_fallthru
          _
        // Predicated region
        $region29: #{tpu_custom_call.1} parent=11 // pred_check
          %p299 = pneg %p198
        $region30: #{tpu_custom_call.1} parent=11 // pred_check_branch
          %301 = sbr.rel (%p299) target = $region32
        $region31: #{tpu_custom_call.1} parent=11 // pred_region
          %s303 = ssub.s32 1024, 1024
          %304 = vsyncadd [#allocation10], %s303
          %s305 = smul.addr %s34, 64
          %s306 = scalar_lea.hbm %s6, %s305
          %s307 = sshll.u32 [#allocation11], 4
          %s308 = int_to_ptr.vmem [resolvable:$true] %s307
          %313 = dma.hbm_to_vmem [thread:$0]  %s306, 1024, %s308, [#allocation10], 64, 64, 4
        $region32: #{tpu_custom_call.1} parent=11 // pred_fallthru
          _
        // Predicated region
        $region33: #{tpu_custom_call.1} parent=11 // pred_check
          %p314 = pneg %p224
        $region34: #{tpu_custom_call.1} parent=11 // pred_check_branch
          %316 = sbr.rel (%p314) target = $region36
        $region35: #{tpu_custom_call.1} parent=11 // pred_region
          %p317 = scmp.lt.s32.totalorder %s34, 0
          %s318 = scalar_select %p317, %s34, 0
          %s319 = scalar_lea.vmem %s7, %s318
        $region36: #{tpu_custom_call.1} parent=11 // pred_fallthru
          _
      $region12: #{tpu_custom_call.1} parent=5 // pred_fallthru
        _
      %p320 = scmp.lt.s32.totalorder %s24, 2
      // Predicated region
      $region37: #{tpu_custom_call.1} parent=5 // pred_check
        %p321 = pneg %p320
      $region38: #{tpu_custom_call.1} parent=5 // pred_check_branch
        %323 = sbr.rel (%p321) target = $region40
      $region39: #{tpu_custom_call.1} parent=5 // pred_region
        // Predicated region
        $region41: #{tpu_custom_call.1} parent=39 // pred_check
          %p324 = pneg %p56
        $region42: #{tpu_custom_call.1} parent=39 // pred_check_branch
          %326 = sbr.rel (%p324) target = $region44
        $region43: #{tpu_custom_call.1} parent=39 // pred_region
          %s327 = sand.u32 %s46, 1
          %s328 = scalar_lea.sflag [#allocation4], %s327
          %s329 = sand.u32 %s46, 1
          %s330 = smul.addr %s329, 256
          %s331 = scalar_lea.vmem [#allocation3], %s330
          %s332 = smul.u32 32, %s31
          %s334 = ssub.s32 4096, 4096
          %335 = vsyncadd %s328, %s334
          %s336 = smul.addr %s332, 128
          %s337 = scalar_lea.hbm %s0, %s336
          %s338 = sshll.u32 %s331, 4
          %s339 = int_to_ptr.vmem [resolvable:$true] %s338
          %344 = dma.hbm_to_vmem [thread:$0]  %s337, 4096, %s339, %s328, 128, 128, 8
        $region44: #{tpu_custom_call.1} parent=39 // pred_fallthru
          _
        // Predicated region
        $region45: #{tpu_custom_call.1} parent=39 // pred_check
          %p345 = pneg %p82
        $region46: #{tpu_custom_call.1} parent=39 // pred_check_branch
          %347 = sbr.rel (%p345) target = $region48
        $region47: #{tpu_custom_call.1} parent=39 // pred_region
          %s348 = sand.u32 %s24, 1
          %s349 = scalar_lea.sflag [#allocation7], %s348
          %s350 = sand.u32 %s72, 1
          %s351 = smul.addr %s350, 256
          %s352 = scalar_lea.vmem [#allocation6], %s351
          %s353 = smul.u32 32, %s31
          %s355 = ssub.s32 4096, 4096
          %356 = vsyncadd %s349, %s355
          %s357 = smul.addr %s353, 128
          %s358 = scalar_lea.hbm %s1, %s357
          %s359 = sshll.u32 %s352, 4
          %s360 = int_to_ptr.vmem [resolvable:$true] %s359
          %365 = dma.hbm_to_vmem [thread:$0]  %s358, 4096, %s360, %s349, 128, 128, 8
        $region48: #{tpu_custom_call.1} parent=39 // pred_fallthru
          _
      $region40: #{tpu_custom_call.1} parent=5 // pred_fallthru
        _
      %p366 = scmp.le.s32.totalorder 1, %s24
      %p367 = scmp.lt.s32.totalorder %s24, 3
      %p368 = pnand %p366, %p367
      %p369 = pneg %p368
      // Predicated region
      $region49: #{tpu_custom_call.1} parent=5 // pred_check
        _
      $region50: #{tpu_custom_call.1} parent=5 // pred_check_branch
        %371 = sbr.rel (%p368) target = $region52
      $region51: #{tpu_custom_call.1} parent=5 // pred_region
        %s372 = ssub.s32 %s24, 1
        %s373 = sand.u32 %s49, 1
        %s374 = scalar_lea.sflag [#allocation4], %s373
        %s375 = sand.u32 %s49, 1
        %s376 = smul.addr %s375, 256
        %s377 = scalar_lea.vmem [#allocation3], %s376
        // Predicated region
        $region53: #{tpu_custom_call.1} parent=51 // pred_check
          %p378 = pneg %p62
        $region54: #{tpu_custom_call.1} parent=51 // pred_check_branch
          %380 = sbr.rel (%p378) target = $region56
        $region55: #{tpu_custom_call.1} parent=51 // pred_region
          %381 = dma.done %s374, 4096
        $region56: #{tpu_custom_call.1} parent=51 // pred_fallthru
          _
        %s382 = sand.u32 %s29, 1
        %s383 = scalar_lea.sflag [#allocation7], %s382
        %s384 = sand.u32 %s75, 1
        %s385 = smul.addr %s384, 256
        %s386 = scalar_lea.vmem [#allocation6], %s385
        // Predicated region
        $region57: #{tpu_custom_call.1} parent=51 // pred_check
          %p387 = pneg %p88
        $region58: #{tpu_custom_call.1} parent=51 // pred_check_branch
          %389 = sbr.rel (%p387) target = $region60
        $region59: #{tpu_custom_call.1} parent=51 // pred_region
          %390 = dma.done %s383, 4096
        $region60: #{tpu_custom_call.1} parent=51 // pred_fallthru
          _
        // Predicated region
        $region61: #{tpu_custom_call.1} parent=51 // pred_check
          %p391 = pneg %p109
        $region62: #{tpu_custom_call.1} parent=51 // pred_check_branch
          %393 = sbr.rel (%p391) target = $region64
        $region63: #{tpu_custom_call.1} parent=51 // pred_region
          %394 = dma.done [#allocation7], 1024
        $region64: #{tpu_custom_call.1} parent=51 // pred_fallthru
          _
        // Predicated region
        $region65: #{tpu_custom_call.1} parent=51 // pred_check
          %p395 = pneg %p130
        $region66: #{tpu_custom_call.1} parent=51 // pred_check_branch
          %397 = sbr.rel (%p395) target = $region68
        $region67: #{tpu_custom_call.1} parent=51 // pred_region
          %398 = dma.done [#allocation10], 1024
        $region68: #{tpu_custom_call.1} parent=51 // pred_fallthru
          _
        // Predicated region
        $region69: #{tpu_custom_call.1} parent=51 // pred_check
          %p399 = pneg %p198
        $region70: #{tpu_custom_call.1} parent=51 // pred_check_branch
          %401 = sbr.rel (%p399) target = $region72
        $region71: #{tpu_custom_call.1} parent=51 // pred_region
          %402 = dma.done [#allocation10], 1024
        $region72: #{tpu_custom_call.1} parent=51 // pred_fallthru
          _
        %s403 = sand.u32 %s49, 1
        %s404 = scalar_lea.sflag [#allocation4], %s403
        %s405 = sand.u32 %s49, 1
        %s406 = smul.addr %s405, 256
        %s407 = scalar_lea.vmem [#allocation3], %s406
        %p408 = pneg %p62
        %p409 = pneg %p59
        %s410 = sand.u32 %s29, 1
        %s411 = scalar_lea.sflag [#allocation7], %s410
        %s412 = sand.u32 %s75, 1
        %s413 = smul.addr %s412, 256
        %s414 = scalar_lea.vmem [#allocation6], %s413
        %p415 = pneg %p88
        %p416 = pneg %p85
        %p417 = pneg %p109
        %p418 = pneg %p106
        %p419 = pneg %p130
        %p420 = pneg %p127
        %p421 = pneg %p151
        %p422 = pneg %p148
        %p423 = pneg %p172
        %p424 = pneg %p169
        %p425 = pneg %p198
        %p426 = pneg %p195
        %p427 = scmp.lt.s32.totalorder %s34, 0
        %s428 = scalar_select %p427, %s34, 0
        %s429 = scalar_lea.vmem %s7, %s428
        %p430 = pneg %p224
        %p431 = pneg %p221
        %p432 = pneg %p252
        %p433 = pneg %p249
        %s434 = sand.u32 %s239, 1
        %s435 = scalar_lea.sflag [#allocation5], %s434
        %s436 = sand.u32 %s239, 1
        %s437 = smul.addr %s436, 256
        %s438 = scalar_lea.vmem [#allocation12], %s437
        %s439 = smul.u32 32, %s33
        %s440 = smul.u32 32, %s33
        %p441 = scmp.lt.s32.totalorder %s34, 0
        %s442 = scalar_select %p441, %s34, 0
        %s443 = scalar_lea.vmem %s7, %s442
        %s444 = smul.u32 32, %s33
        %p446 = scmp.eq.s32.totalorder %s34, 0
        // Predicated region
        $region73: #{tpu_custom_call.1} parent=51 // pred_check
          %p447 = pneg %p446
        $region74: #{tpu_custom_call.1} parent=51 // pred_check_branch
          %449 = sbr.rel (%p447) target = $region76
        $region75: #{tpu_custom_call.1} parent=51 // pred_region
          %v450 = vld [vmem:[%s377] sm:$0xff]
          %v451 = vld [vmem:[%s377 + $0x8] sm:$0xff]
          %v452 = vld [vmem:[%s377 + $0x10] sm:$0xff]
          %v453 = vld [vmem:[%s377 + $0x18] sm:$0xff]
          %v454 = vld [vmem:[%s377 + $0x20] sm:$0xff]
          %v455 = vld [vmem:[%s377 + $0x28] sm:$0xff]
          %v456 = vld [vmem:[%s377 + $0x30] sm:$0xff]
          %v457 = vld [vmem:[%s377 + $0x38] sm:$0xff]
          %v458 = vld [vmem:[%s377 + $0x40] sm:$0xff]
          %v459 = vld [vmem:[%s377 + $0x48] sm:$0xff]
          %v460 = vld [vmem:[%s377 + $0x50] sm:$0xff]
          %v461 = vld [vmem:[%s377 + $0x58] sm:$0xff]
          %v462 = vld [vmem:[%s377 + $0x60] sm:$0xff]
          %v463 = vld [vmem:[%s377 + $0x68] sm:$0xff]
          %v464 = vld [vmem:[%s377 + $0x70] sm:$0xff]
          %v465 = vld [vmem:[%s377 + $0x78] sm:$0xff]
          %v466 = vld [vmem:[%s377 + $0x80] sm:$0xff]
          %v467 = vld [vmem:[%s377 + $0x88] sm:$0xff]
          %v468 = vld [vmem:[%s377 + $0x90] sm:$0xff]
          %v469 = vld [vmem:[%s377 + $0x98] sm:$0xff]
          %v470 = vld [vmem:[%s377 + $0xa0] sm:$0xff]
          %v471 = vld [vmem:[%s377 + $0xa8] sm:$0xff]
          %v472 = vld [vmem:[%s377 + $0xb0] sm:$0xff]
          %v473 = vld [vmem:[%s377 + $0xb8] sm:$0xff]
          %v474 = vld [vmem:[%s377 + $0xc0] sm:$0xff]
          %v475 = vld [vmem:[%s377 + $0xc8] sm:$0xff]
          %v476 = vld [vmem:[%s377 + $0xd0] sm:$0xff]
          %v477 = vld [vmem:[%s377 + $0xd8] sm:$0xff]
          %v478 = vld [vmem:[%s377 + $0xe0] sm:$0xff]
          %v479 = vld [vmem:[%s377 + $0xe8] sm:$0xff]
          %v480 = vld [vmem:[%s377 + $0xf0] sm:$0xff]
          %v481 = vld [vmem:[%s377 + $0xf8] sm:$0xff]
          %v482 = vld [vmem:[%s386] sm:$0xff]
          %v483 = vld [vmem:[%s386 + $0x8] sm:$0xff]
          %v484 = vld [vmem:[%s386 + $0x10] sm:$0xff]
          %v485 = vld [vmem:[%s386 + $0x18] sm:$0xff]
          %v486 = vld [vmem:[%s386 + $0x20] sm:$0xff]
          %v487 = vld [vmem:[%s386 + $0x28] sm:$0xff]
          %v488 = vld [vmem:[%s386 + $0x30] sm:$0xff]
          %v489 = vld [vmem:[%s386 + $0x38] sm:$0xff]
          %v490 = vld [vmem:[%s386 + $0x40] sm:$0xff]
          %v491 = vld [vmem:[%s386 + $0x48] sm:$0xff]
          %v492 = vld [vmem:[%s386 + $0x50] sm:$0xff]
          %v493 = vld [vmem:[%s386 + $0x58] sm:$0xff]
          %v494 = vld [vmem:[%s386 + $0x60] sm:$0xff]
          %v495 = vld [vmem:[%s386 + $0x68] sm:$0xff]
          %v496 = vld [vmem:[%s386 + $0x70] sm:$0xff]
          %v497 = vld [vmem:[%s386 + $0x78] sm:$0xff]
          %v498 = vld [vmem:[%s386 + $0x80] sm:$0xff]
          %v499 = vld [vmem:[%s386 + $0x88] sm:$0xff]
          %v500 = vld [vmem:[%s386 + $0x90] sm:$0xff]
          %v501 = vld [vmem:[%s386 + $0x98] sm:$0xff]
          %v502 = vld [vmem:[%s386 + $0xa0] sm:$0xff]
          %v503 = vld [vmem:[%s386 + $0xa8] sm:$0xff]
          %v504 = vld [vmem:[%s386 + $0xb0] sm:$0xff]
          %v505 = vld [vmem:[%s386 + $0xb8] sm:$0xff]
          %v506 = vld [vmem:[%s386 + $0xc0] sm:$0xff]
          %v507 = vld [vmem:[%s386 + $0xc8] sm:$0xff]
          %v508 = vld [vmem:[%s386 + $0xd0] sm:$0xff]
          %v509 = vld [vmem:[%s386 + $0xd8] sm:$0xff]
          %v510 = vld [vmem:[%s386 + $0xe0] sm:$0xff]
          %v511 = vld [vmem:[%s386 + $0xe8] sm:$0xff]
          %v512 = vld [vmem:[%s386 + $0xf0] sm:$0xff]
          %v513 = vld [vmem:[%s386 + $0xf8] sm:$0xff]
          %v514 = vsub.f32 0.0, %v482
          %v515 = vsub.f32 0.0, %v483
          %v516 = vsub.f32 0.0, %v484
          %v517 = vsub.f32 0.0, %v485
          %v518 = vsub.f32 0.0, %v486
          %v519 = vsub.f32 0.0, %v487
          %v520 = vsub.f32 0.0, %v488
          %v521 = vsub.f32 0.0, %v489
          %v522 = vsub.f32 0.0, %v490
          %v523 = vsub.f32 0.0, %v491
          %v524 = vsub.f32 0.0, %v492
          %v525 = vsub.f32 0.0, %v493
          %v526 = vsub.f32 0.0, %v494
          %v527 = vsub.f32 0.0, %v495
          %v528 = vsub.f32 0.0, %v496
          %v529 = vsub.f32 0.0, %v497
          %v530 = vsub.f32 0.0, %v498
          %v531 = vsub.f32 0.0, %v499
          %v532 = vsub.f32 0.0, %v500
          %v533 = vsub.f32 0.0, %v501
          %v534 = vsub.f32 0.0, %v502
          %v535 = vsub.f32 0.0, %v503
          %v536 = vsub.f32 0.0, %v504
          %v537 = vsub.f32 0.0, %v505
          %v538 = vsub.f32 0.0, %v506
          %v539 = vsub.f32 0.0, %v507
          %v540 = vsub.f32 0.0, %v508
          %v541 = vsub.f32 0.0, %v509
          %v542 = vsub.f32 0.0, %v510
          %v543 = vsub.f32 0.0, %v511
          %v544 = vsub.f32 0.0, %v512
          %v545 = vsub.f32 0.0, %v513
          %v546 = vmul.f32 %v514, 1.442695
          %v547 = vpow.pop %v546
          %v548 = vmul.f32 %v515, 1.442695
          %v549 = vpow.pop %v548
          %v550 = vmul.f32 %v516, 1.442695
          %v551 = vpow.pop %v550
          %v552 = vmul.f32 %v517, 1.442695
          %v553 = vpow.pop %v552
          %v554 = vmul.f32 %v518, 1.442695
          %v555 = vpow.pop %v554
          %v556 = vmul.f32 %v519, 1.442695
          %v557 = vpow.pop %v556
          %v558 = vmul.f32 %v520, 1.442695
          %v559 = vpow.pop %v558
          %v560 = vmul.f32 %v521, 1.442695
          %v561 = vpow.pop %v560
          %v562 = vmul.f32 %v522, 1.442695
          %v563 = vpow.pop %v562
          %v564 = vmul.f32 %v523, 1.442695
          %v565 = vpow.pop %v564
          %v566 = vmul.f32 %v524, 1.442695
          %v567 = vpow.pop %v566
          %v568 = vmul.f32 %v525, 1.442695
          %v569 = vpow.pop %v568
          %v570 = vmul.f32 %v526, 1.442695
          %v571 = vpow.pop %v570
          %v572 = vmul.f32 %v527, 1.442695
          %v573 = vpow.pop %v572
          %v574 = vmul.f32 %v528, 1.442695
          %v575 = vpow.pop %v574
          %v576 = vmul.f32 %v529, 1.442695
          %v577 = vpow.pop %v576
          %v578 = vmul.f32 %v530, 1.442695
          %v579 = vpow.pop %v578
          %v580 = vmul.f32 %v531, 1.442695
          %v581 = vpow.pop %v580
          %v582 = vmul.f32 %v532, 1.442695
          %v583 = vpow.pop %v582
          %v584 = vmul.f32 %v533, 1.442695
          %v585 = vpow.pop %v584
          %v586 = vmul.f32 %v534, 1.442695
          %v587 = vpow.pop %v586
          %v588 = vmul.f32 %v535, 1.442695
          %v589 = vpow.pop %v588
          %v590 = vmul.f32 %v536, 1.442695
          %v591 = vpow.pop %v590
          %v592 = vmul.f32 %v537, 1.442695
          %v593 = vpow.pop %v592
          %v594 = vmul.f32 %v538, 1.442695
          %v595 = vpow.pop %v594
          %v596 = vmul.f32 %v539, 1.442695
          %v597 = vpow.pop %v596
          %v598 = vmul.f32 %v540, 1.442695
          %v599 = vpow.pop %v598
          %v600 = vmul.f32 %v541, 1.442695
          %v601 = vpow.pop %v600
          %v602 = vmul.f32 %v542, 1.442695
          %v603 = vpow.pop %v602
          %v604 = vmul.f32 %v543, 1.442695
          %v605 = vpow.pop %v604
          %v606 = vmul.f32 %v544, 1.442695
          %v607 = vpow.pop %v606
          %v608 = vmul.f32 %v545, 1.442695
          %v609 = vpow.pop %v608
          %v610 = vadd.f32 %v547, 1.0
          %v611 = vadd.f32 %v549, 1.0
          %v612 = vadd.f32 %v551, 1.0
          %v613 = vadd.f32 %v553, 1.0
          %v614 = vadd.f32 %v555, 1.0
          %v615 = vadd.f32 %v557, 1.0
          %v616 = vadd.f32 %v559, 1.0
          %v617 = vadd.f32 %v561, 1.0
          %v618 = vadd.f32 %v563, 1.0
          %v619 = vadd.f32 %v565, 1.0
          %v620 = vadd.f32 %v567, 1.0
          %v621 = vadd.f32 %v569, 1.0
          %v622 = vadd.f32 %v571, 1.0
          %v623 = vadd.f32 %v573, 1.0
          %v624 = vadd.f32 %v575, 1.0
          %v625 = vadd.f32 %v577, 1.0
          %v626 = vadd.f32 %v579, 1.0
          %v627 = vadd.f32 %v581, 1.0
          %v628 = vadd.f32 %v583, 1.0
          %v629 = vadd.f32 %v585, 1.0
          %v630 = vadd.f32 %v587, 1.0
          %v631 = vadd.f32 %v589, 1.0
          %v632 = vadd.f32 %v591, 1.0
          %v633 = vadd.f32 %v593, 1.0
          %v634 = vadd.f32 %v595, 1.0
          %v635 = vadd.f32 %v597, 1.0
          %v636 = vadd.f32 %v599, 1.0
          %v637 = vadd.f32 %v601, 1.0
          %v638 = vadd.f32 %v603, 1.0
          %v639 = vadd.f32 %v605, 1.0
          %v640 = vadd.f32 %v607, 1.0
          %v641 = vadd.f32 %v609, 1.0
          %v642 = vrcp.pop %v610
          %v643 = vrcp.pop %v611
          %v644 = vrcp.pop %v612
          %v645 = vrcp.pop %v613
          %v646 = vrcp.pop %v614
          %v647 = vrcp.pop %v615
          %v648 = vrcp.pop %v616
          %v649 = vrcp.pop %v617
          %v650 = vrcp.pop %v618
          %v651 = vrcp.pop %v619
          %v652 = vrcp.pop %v620
          %v653 = vrcp.pop %v621
          %v654 = vrcp.pop %v622
          %v655 = vrcp.pop %v623
          %v656 = vrcp.pop %v624
          %v657 = vrcp.pop %v625
          %v658 = vrcp.pop %v626
          %v659 = vrcp.pop %v627
          %v660 = vrcp.pop %v628
          %v661 = vrcp.pop %v629
          %v662 = vrcp.pop %v630
          %v663 = vrcp.pop %v631
          %v664 = vrcp.pop %v632
          %v665 = vrcp.pop %v633
          %v666 = vrcp.pop %v634
          %v667 = vrcp.pop %v635
          %v668 = vrcp.pop %v636
          %v669 = vrcp.pop %v637
          %v670 = vrcp.pop %v638
          %v671 = vrcp.pop %v639
          %v672 = vrcp.pop %v640
          %v673 = vrcp.pop %v641
          %v674 = vmul.f32 %v482, %v642
          %v675 = vmul.f32 %v483, %v643
          %v676 = vmul.f32 %v484, %v644
          %v677 = vmul.f32 %v485, %v645
          %v678 = vmul.f32 %v486, %v646
          %v679 = vmul.f32 %v487, %v647
          %v680 = vmul.f32 %v488, %v648
          %v681 = vmul.f32 %v489, %v649
          %v682 = vmul.f32 %v490, %v650
          %v683 = vmul.f32 %v491, %v651
          %v684 = vmul.f32 %v492, %v652
          %v685 = vmul.f32 %v493, %v653
          %v686 = vmul.f32 %v494, %v654
          %v687 = vmul.f32 %v495, %v655
          %v688 = vmul.f32 %v496, %v656
          %v689 = vmul.f32 %v497, %v657
          %v690 = vmul.f32 %v498, %v658
          %v691 = vmul.f32 %v499, %v659
          %v692 = vmul.f32 %v500, %v660
          %v693 = vmul.f32 %v501, %v661
          %v694 = vmul.f32 %v502, %v662
          %v695 = vmul.f32 %v503, %v663
          %v696 = vmul.f32 %v504, %v664
          %v697 = vmul.f32 %v505, %v665
          %v698 = vmul.f32 %v506, %v666
          %v699 = vmul.f32 %v507, %v667
          %v700 = vmul.f32 %v508, %v668
          %v701 = vmul.f32 %v509, %v669
          %v702 = vmul.f32 %v510, %v670
          %v703 = vmul.f32 %v511, %v671
          %v704 = vmul.f32 %v512, %v672
          %v705 = vmul.f32 %v513, %v673
          %v706 = vpack.c.bf16 %v675, %v674
          %v707 = vpack.c.bf16 %v677, %v676
          %v708 = vpack.c.bf16 %v679, %v678
          %v709 = vpack.c.bf16 %v681, %v680
          %v710 = vpack.c.bf16 %v683, %v682
          %v711 = vpack.c.bf16 %v685, %v684
          %v712 = vpack.c.bf16 %v687, %v686
          %v713 = vpack.c.bf16 %v689, %v688
          %v714 = vpack.c.bf16 %v691, %v690
          %v715 = vpack.c.bf16 %v693, %v692
          %v716 = vpack.c.bf16 %v695, %v694
          %v717 = vpack.c.bf16 %v697, %v696
          %v718 = vpack.c.bf16 %v699, %v698
          %v719 = vpack.c.bf16 %v701, %v700
          %v720 = vpack.c.bf16 %v703, %v702
          %v721 = vpack.c.bf16 %v705, %v704
          %v722 = vld [vmem:[#allocation8] sm:$0xf]
          %v723 = vld [vmem:[#allocation8 + $0x4] sm:$0xf]
          %v724 = vld [vmem:[#allocation8 + $0x8] sm:$0xf]
          %v725 = vld [vmem:[#allocation8 + $0xc] sm:$0xf]
          %v726 = vld [vmem:[#allocation8 + $0x10] sm:$0xf]
          %v727 = vld [vmem:[#allocation8 + $0x14] sm:$0xf]
          %v728 = vld [vmem:[#allocation8 + $0x18] sm:$0xf]
          %v729 = vld [vmem:[#allocation8 + $0x1c] sm:$0xf]
          %v730 = vld [vmem:[#allocation8 + $0x20] sm:$0xf]
          %v731 = vld [vmem:[#allocation8 + $0x24] sm:$0xf]
          %v732 = vld [vmem:[#allocation8 + $0x28] sm:$0xf]
          %v733 = vld [vmem:[#allocation8 + $0x2c] sm:$0xf]
          %v734 = vld [vmem:[#allocation8 + $0x30] sm:$0xf]
          %v735 = vld [vmem:[#allocation8 + $0x34] sm:$0xf]
          %v736 = vld [vmem:[#allocation8 + $0x38] sm:$0xf]
          %v737 = vld [vmem:[#allocation8 + $0x3c] sm:$0xf]
          %v738 = vld [vmem:[%s4] sm:$0x1]
          %v740 = vlaneseq
          %v741 = vshrl.u32 %v740, 7
          %v742 = vsub.s32 0, %v741
          %v743 = vrot.slane %v738, %v742
          %v761 = vunpack.c.l.b16 %v722
          %v762 = vunpack.c.l.b16 %v723
          %v763 = vunpack.c.l.b16 %v724
          %v764 = vunpack.c.l.b16 %v725
          %v765 = vunpack.c.l.b16 %v726
          %v766 = vunpack.c.l.b16 %v727
          %v767 = vunpack.c.l.b16 %v728
          %v768 = vunpack.c.l.b16 %v729
          %v769 = vunpack.c.l.b16 %v730
          %v770 = vunpack.c.l.b16 %v731
          %v771 = vunpack.c.l.b16 %v732
          %v772 = vunpack.c.l.b16 %v733
          %v773 = vunpack.c.l.b16 %v734
          %v774 = vunpack.c.l.b16 %v735
          %v775 = vunpack.c.l.b16 %v736
          %v776 = vunpack.c.l.b16 %v737
          %v777 = vpack.c.b16 %v762, %v761
          %v778 = vpack.c.b16 %v764, %v763
          %v779 = vpack.c.b16 %v766, %v765
          %v780 = vpack.c.b16 %v768, %v767
          %v781 = vpack.c.b16 %v770, %v769
          %v782 = vpack.c.b16 %v772, %v771
          %v783 = vpack.c.b16 %v774, %v773
          %v784 = vpack.c.b16 %v776, %v775
          %793 = vmatprep.subr.bf16.mxu0 0
          %794 = vmatpush1.bf16.msra.mxu0 %v784
          %795 = vmatprep.subr.bf16.mxu0 0
          %796 = vmatpush1.bf16.msra.mxu0 %v783
          %797 = vmatprep.subr.bf16.mxu0 0
          %798 = vmatpush1.bf16.msra.mxu0 %v782
          %799 = vmatprep.subr.bf16.mxu0 0
          %800 = vmatpush1.bf16.msra.mxu0 %v781
          %801 = vmatprep.subr.bf16.mxu0 0
          %802 = vmatpush1.bf16.msra.mxu0 %v780
          %803 = vmatprep.subr.bf16.mxu0 0
          %804 = vmatpush1.bf16.msra.mxu0 %v779
          %805 = vmatprep.subr.bf16.mxu0 0
          %806 = vmatpush1.bf16.msra.mxu0 %v778
          %807 = vmatprep.subr.bf16.mxu0 0
          %808 = vmatpush1.bf16.msra.mxu0 %v777
          %809 = vmatprep.subr.bf16.mxu0 0
          %810 = vmatpush2.bf16.msra.mxu0 0
          %811 = vmatprep.subr.bf16.mxu0 0
          %812 = vmatpush2.bf16.msra.mxu0 0
          %813 = vmatprep.subr.bf16.mxu0 0
          %814 = vmatpush2.bf16.msra.mxu0 0
          %815 = vmatprep.subr.bf16.mxu0 0
          %816 = vmatpush2.bf16.msra.mxu0 0
          %817 = vmatprep.subr.bf16.mxu0 0
          %818 = vmatpush2.bf16.msra.mxu0 0
          %819 = vmatprep.subr.bf16.mxu0 0
          %820 = vmatpush2.bf16.msra.mxu0 0
          %821 = vmatprep.subr.bf16.mxu0 0
          %822 = vmatpush2.bf16.msra.mxu0 0
          %823 = vmatprep.subr.bf16.mxu0 0
          %824 = vmatpush2.bf16.msra.mxu0 0
          %825 = vmatprep.mubr.bf16.mxu0 0
          %826 = vmatmul.mubr.bf16.gmra.mxu0 %v706
          %v827 = vpop.f32.mrf.mxu0
          %v828 = vadd.f32 %v743, %v827
          %v829 = vpop.f32.mrf.mxu0
          %v830 = vpop.f32.mrf.mxu0
          %v831 = vadd.f32 %v743, %v830
          %v832 = vpop.f32.mrf.mxu0
          %833 = vmatprep.mubr.bf16.mxu0 0
          %834 = vmatmul.mubr.bf16.gmra.mxu0 %v707
          %v835 = vpop.f32.mrf.mxu0
          %v836 = vadd.f32 %v743, %v835
          %v837 = vpop.f32.mrf.mxu0
          %v838 = vpop.f32.mrf.mxu0
          %v839 = vadd.f32 %v743, %v838
          %v840 = vpop.f32.mrf.mxu0
          %841 = vmatprep.mubr.bf16.mxu0 0
          %842 = vmatmul.mubr.bf16.gmra.mxu0 %v708
          %v843 = vpop.f32.mrf.mxu0
          %v844 = vadd.f32 %v743, %v843
          %v845 = vpop.f32.mrf.mxu0
          %v846 = vpop.f32.mrf.mxu0
          %v847 = vadd.f32 %v743, %v846
          %v848 = vpop.f32.mrf.mxu0
          %849 = vmatprep.mubr.bf16.mxu0 0
          %850 = vmatmul.mubr.bf16.gmra.mxu0 %v709
          %v851 = vpop.f32.mrf.mxu0
          %v852 = vadd.f32 %v743, %v851
          %v853 = vpop.f32.mrf.mxu0
          %v854 = vpop.f32.mrf.mxu0
          %v855 = vadd.f32 %v743, %v854
          %v856 = vpop.f32.mrf.mxu0
          %857 = vmatprep.mubr.bf16.mxu0 0
          %858 = vmatmul.mubr.bf16.gmra.mxu0 %v710
          %v859 = vpop.f32.mrf.mxu0
          %v860 = vadd.f32 %v743, %v859
          %v861 = vpop.f32.mrf.mxu0
          %v862 = vpop.f32.mrf.mxu0
          %v863 = vadd.f32 %v743, %v862
          %v864 = vpop.f32.mrf.mxu0
          %865 = vmatprep.mubr.bf16.mxu0 0
          %866 = vmatmul.mubr.bf16.gmra.mxu0 %v711
          %v867 = vpop.f32.mrf.mxu0
          %v868 = vadd.f32 %v743, %v867
          %v869 = vpop.f32.mrf.mxu0
          %v870 = vpop.f32.mrf.mxu0
          %v871 = vadd.f32 %v743, %v870
          %v872 = vpop.f32.mrf.mxu0
          %873 = vmatprep.mubr.bf16.mxu0 0
          %874 = vmatmul.mubr.bf16.gmra.mxu0 %v712
          %v875 = vpop.f32.mrf.mxu0
          %v876 = vadd.f32 %v743, %v875
          %v877 = vpop.f32.mrf.mxu0
          %v878 = vpop.f32.mrf.mxu0
          %v879 = vadd.f32 %v743, %v878
          %v880 = vpop.f32.mrf.mxu0
          %881 = vmatprep.mubr.bf16.mxu0 0
          %882 = vmatmul.mubr.bf16.gmra.mxu0 %v713
          %v883 = vpop.f32.mrf.mxu0
          %v884 = vadd.f32 %v743, %v883
          %v885 = vpop.f32.mrf.mxu0
          %v886 = vpop.f32.mrf.mxu0
          %v887 = vadd.f32 %v743, %v886
          %v888 = vpop.f32.mrf.mxu0
          %889 = vmatprep.mubr.bf16.mxu0 0
          %890 = vmatmul.mubr.bf16.gmra.mxu0 %v714
          %v891 = vpop.f32.mrf.mxu0
          %v892 = vadd.f32 %v743, %v891
          %v893 = vpop.f32.mrf.mxu0
          %v894 = vpop.f32.mrf.mxu0
          %v895 = vadd.f32 %v743, %v894
          %v896 = vpop.f32.mrf.mxu0
          %897 = vmatprep.mubr.bf16.mxu0 0
          %898 = vmatmul.mubr.bf16.gmra.mxu0 %v715
          %v899 = vpop.f32.mrf.mxu0
          %v900 = vadd.f32 %v743, %v899
          %v901 = vpop.f32.mrf.mxu0
          %v902 = vpop.f32.mrf.mxu0
          %v903 = vadd.f32 %v743, %v902
          %v904 = vpop.f32.mrf.mxu0
          %905 = vmatprep.mubr.bf16.mxu0 0
          %906 = vmatmul.mubr.bf16.gmra.mxu0 %v716
          %v907 = vpop.f32.mrf.mxu0
          %v908 = vadd.f32 %v743, %v907
          %v909 = vpop.f32.mrf.mxu0
          %v910 = vpop.f32.mrf.mxu0
          %v911 = vadd.f32 %v743, %v910
          %v912 = vpop.f32.mrf.mxu0
          %913 = vmatprep.mubr.bf16.mxu0 0
          %914 = vmatmul.mubr.bf16.gmra.mxu0 %v717
          %v915 = vpop.f32.mrf.mxu0
          %v916 = vadd.f32 %v743, %v915
          %v917 = vpop.f32.mrf.mxu0
          %v918 = vpop.f32.mrf.mxu0
          %v919 = vadd.f32 %v743, %v918
          %v920 = vpop.f32.mrf.mxu0
          %921 = vmatprep.mubr.bf16.mxu0 0
          %922 = vmatmul.mubr.bf16.gmra.mxu0 %v718
          %v923 = vpop.f32.mrf.mxu0
          %v924 = vadd.f32 %v743, %v923
          %v925 = vpop.f32.mrf.mxu0
          %v926 = vpop.f32.mrf.mxu0
          %v927 = vadd.f32 %v743, %v926
          %v928 = vpop.f32.mrf.mxu0
          %929 = vmatprep.mubr.bf16.mxu0 0
          %930 = vmatmul.mubr.bf16.gmra.mxu0 %v719
          %v931 = vpop.f32.mrf.mxu0
          %v932 = vadd.f32 %v743, %v931
          %v933 = vpop.f32.mrf.mxu0
          %v934 = vpop.f32.mrf.mxu0
          %v935 = vadd.f32 %v743, %v934
          %v936 = vpop.f32.mrf.mxu0
          %937 = vmatprep.mubr.bf16.mxu0 0
          %938 = vmatmul.mubr.bf16.gmra.mxu0 %v720
          %v939 = vpop.f32.mrf.mxu0
          %v940 = vadd.f32 %v743, %v939
          %v941 = vpop.f32.mrf.mxu0
          %v942 = vpop.f32.mrf.mxu0
          %v943 = vadd.f32 %v743, %v942
          %v944 = vpop.f32.mrf.mxu0
          %945 = vmatprep.mubr.bf16.mxu0 0
          %946 = vmatmul.mubr.bf16.gmra.mxu0 %v721
          %v947 = vpop.f32.mrf.mxu0
          %v948 = vadd.f32 %v743, %v947
          %v949 = vpop.f32.mrf.mxu0
          %v950 = vpop.f32.mrf.mxu0
          %v951 = vadd.f32 %v743, %v950
          %v952 = vpop.f32.mrf.mxu0
          %953 = vdwg.mxu0
          %v954 = vld [vmem:[#allocation9] sm:$0xf]
          %v955 = vld [vmem:[#allocation9 + $0x4] sm:$0xf]
          %v956 = vld [vmem:[#allocation9 + $0x8] sm:$0xf]
          %v957 = vld [vmem:[#allocation9 + $0xc] sm:$0xf]
          %v958 = vld [vmem:[#allocation9 + $0x10] sm:$0xf]
          %v959 = vld [vmem:[#allocation9 + $0x14] sm:$0xf]
          %v960 = vld [vmem:[#allocation9 + $0x18] sm:$0xf]
          %v961 = vld [vmem:[#allocation9 + $0x1c] sm:$0xf]
          %v962 = vld [vmem:[#allocation9 + $0x20] sm:$0xf]
          %v963 = vld [vmem:[#allocation9 + $0x24] sm:$0xf]
          %v964 = vld [vmem:[#allocation9 + $0x28] sm:$0xf]
          %v965 = vld [vmem:[#allocation9 + $0x2c] sm:$0xf]
          %v966 = vld [vmem:[#allocation9 + $0x30] sm:$0xf]
          %v967 = vld [vmem:[#allocation9 + $0x34] sm:$0xf]
          %v968 = vld [vmem:[#allocation9 + $0x38] sm:$0xf]
          %v969 = vld [vmem:[#allocation9 + $0x3c] sm:$0xf]
          %v970 = vld [vmem:[%s5] sm:$0x1]
          %v972 = vlaneseq
          %v973 = vshrl.u32 %v972, 7
          %v974 = vsub.s32 0, %v973
          %v975 = vrot.slane %v970, %v974
          %v993 = vunpack.c.l.b16 %v954
          %v994 = vunpack.c.l.b16 %v955
          %v995 = vunpack.c.l.b16 %v956
          %v996 = vunpack.c.l.b16 %v957
          %v997 = vunpack.c.l.b16 %v958
          %v998 = vunpack.c.l.b16 %v959
          %v999 = vunpack.c.l.b16 %v960
          %v1000 = vunpack.c.l.b16 %v961
          %v1001 = vunpack.c.l.b16 %v962
          %v1002 = vunpack.c.l.b16 %v963
          %v1003 = vunpack.c.l.b16 %v964
          %v1004 = vunpack.c.l.b16 %v965
          %v1005 = vunpack.c.l.b16 %v966
          %v1006 = vunpack.c.l.b16 %v967
          %v1007 = vunpack.c.l.b16 %v968
          %v1008 = vunpack.c.l.b16 %v969
          %v1009 = vpack.c.b16 %v994, %v993
          %v1010 = vpack.c.b16 %v996, %v995
          %v1011 = vpack.c.b16 %v998, %v997
          %v1012 = vpack.c.b16 %v1000, %v999
          %v1013 = vpack.c.b16 %v1002, %v1001
          %v1014 = vpack.c.b16 %v1004, %v1003
          %v1015 = vpack.c.b16 %v1006, %v1005
          %v1016 = vpack.c.b16 %v1008, %v1007
          %1025 = vmatprep.subr.bf16.mxu0 0
          %1026 = vmatpush1.bf16.msra.mxu0 %v1016
          %1027 = vmatprep.subr.bf16.mxu0 0
          %1028 = vmatpush1.bf16.msra.mxu0 %v1015
          %1029 = vmatprep.subr.bf16.mxu0 0
          %1030 = vmatpush1.bf16.msra.mxu0 %v1014
          %1031 = vmatprep.subr.bf16.mxu0 0
          %1032 = vmatpush1.bf16.msra.mxu0 %v1013
          %1033 = vmatprep.subr.bf16.mxu0 0
          %1034 = vmatpush1.bf16.msra.mxu0 %v1012
          %1035 = vmatprep.subr.bf16.mxu0 0
          %1036 = vmatpush1.bf16.msra.mxu0 %v1011
          %1037 = vmatprep.subr.bf16.mxu0 0
          %1038 = vmatpush1.bf16.msra.mxu0 %v1010
          %1039 = vmatprep.subr.bf16.mxu0 0
          %1040 = vmatpush1.bf16.msra.mxu0 %v1009
          %1041 = vmatprep.subr.bf16.mxu0 0
          %1042 = vmatpush2.bf16.msra.mxu0 0
          %1043 = vmatprep.subr.bf16.mxu0 0
          %1044 = vmatpush2.bf16.msra.mxu0 0
          %1045 = vmatprep.subr.bf16.mxu0 0
          %1046 = vmatpush2.bf16.msra.mxu0 0
          %1047 = vmatprep.subr.bf16.mxu0 0
          %1048 = vmatpush2.bf16.msra.mxu0 0
          %1049 = vmatprep.subr.bf16.mxu0 0
          %1050 = vmatpush2.bf16.msra.mxu0 0
          %1051 = vmatprep.subr.bf16.mxu0 0
          %1052 = vmatpush2.bf16.msra.mxu0 0
          %1053 = vmatprep.subr.bf16.mxu0 0
          %1054 = vmatpush2.bf16.msra.mxu0 0
          %1055 = vmatprep.subr.bf16.mxu0 0
          %1056 = vmatpush2.bf16.msra.mxu0 0
          %1057 = vmatprep.mubr.bf16.mxu0 0
          %1058 = vmatmul.mubr.bf16.gmra.mxu0 %v706
          %v1059 = vpop.f32.mrf.mxu0
          %v1060 = vadd.f32 %v975, %v1059
          %v1061 = vpop.f32.mrf.mxu0
          %v1062 = vpop.f32.mrf.mxu0
          %v1063 = vadd.f32 %v975, %v1062
          %v1064 = vpop.f32.mrf.mxu0
          %1065 = vmatprep.mubr.bf16.mxu0 0
          %1066 = vmatmul.mubr.bf16.gmra.mxu0 %v707
          %v1067 = vpop.f32.mrf.mxu0
          %v1068 = vadd.f32 %v975, %v1067
          %v1069 = vpop.f32.mrf.mxu0
          %v1070 = vpop.f32.mrf.mxu0
          %v1071 = vadd.f32 %v975, %v1070
          %v1072 = vpop.f32.mrf.mxu0
          %1073 = vmatprep.mubr.bf16.mxu0 0
          %1074 = vmatmul.mubr.bf16.gmra.mxu0 %v708
          %v1075 = vpop.f32.mrf.mxu0
          %v1076 = vadd.f32 %v975, %v1075
          %v1077 = vpop.f32.mrf.mxu0
          %v1078 = vpop.f32.mrf.mxu0
          %v1079 = vadd.f32 %v975, %v1078
          %v1080 = vpop.f32.mrf.mxu0
          %1081 = vmatprep.mubr.bf16.mxu0 0
          %1082 = vmatmul.mubr.bf16.gmra.mxu0 %v709
          %v1083 = vpop.f32.mrf.mxu0
          %v1084 = vadd.f32 %v975, %v1083
          %v1085 = vpop.f32.mrf.mxu0
          %v1086 = vpop.f32.mrf.mxu0
          %v1087 = vadd.f32 %v975, %v1086
          %v1088 = vpop.f32.mrf.mxu0
          %1089 = vmatprep.mubr.bf16.mxu0 0
          %1090 = vmatmul.mubr.bf16.gmra.mxu0 %v710
          %v1091 = vpop.f32.mrf.mxu0
          %v1092 = vadd.f32 %v975, %v1091
          %v1093 = vpop.f32.mrf.mxu0
          %v1094 = vpop.f32.mrf.mxu0
          %v1095 = vadd.f32 %v975, %v1094
          %v1096 = vpop.f32.mrf.mxu0
          %1097 = vmatprep.mubr.bf16.mxu0 0
          %1098 = vmatmul.mubr.bf16.gmra.mxu0 %v711
          %v1099 = vpop.f32.mrf.mxu0
          %v1100 = vadd.f32 %v975, %v1099
          %v1101 = vpop.f32.mrf.mxu0
          %v1102 = vpop.f32.mrf.mxu0
          %v1103 = vadd.f32 %v975, %v1102
          %v1104 = vpop.f32.mrf.mxu0
          %1105 = vmatprep.mubr.bf16.mxu0 0
          %1106 = vmatmul.mubr.bf16.gmra.mxu0 %v712
          %v1107 = vpop.f32.mrf.mxu0
          %v1108 = vadd.f32 %v975, %v1107
          %v1109 = vpop.f32.mrf.mxu0
          %v1110 = vpop.f32.mrf.mxu0
          %v1111 = vadd.f32 %v975, %v1110
          %v1112 = vpop.f32.mrf.mxu0
          %1113 = vmatprep.mubr.bf16.mxu0 0
          %1114 = vmatmul.mubr.bf16.gmra.mxu0 %v713
          %v1115 = vpop.f32.mrf.mxu0
          %v1116 = vadd.f32 %v975, %v1115
          %v1117 = vpop.f32.mrf.mxu0
          %v1118 = vpop.f32.mrf.mxu0
          %v1119 = vadd.f32 %v975, %v1118
          %v1120 = vpop.f32.mrf.mxu0
          %1121 = vmatprep.mubr.bf16.mxu0 0
          %1122 = vmatmul.mubr.bf16.gmra.mxu0 %v714
          %v1123 = vpop.f32.mrf.mxu0
          %v1124 = vadd.f32 %v975, %v1123
          %v1125 = vpop.f32.mrf.mxu0
          %v1126 = vpop.f32.mrf.mxu0
          %v1127 = vadd.f32 %v975, %v1126
          %v1128 = vpop.f32.mrf.mxu0
          %1129 = vmatprep.mubr.bf16.mxu0 0
          %1130 = vmatmul.mubr.bf16.gmra.mxu0 %v715
          %v1131 = vpop.f32.mrf.mxu0
          %v1132 = vadd.f32 %v975, %v1131
          %v1133 = vpop.f32.mrf.mxu0
          %v1134 = vpop.f32.mrf.mxu0
          %v1135 = vadd.f32 %v975, %v1134
          %v1136 = vpop.f32.mrf.mxu0
          %1137 = vmatprep.mubr.bf16.mxu0 0
          %1138 = vmatmul.mubr.bf16.gmra.mxu0 %v716
          %v1139 = vpop.f32.mrf.mxu0
          %v1140 = vadd.f32 %v975, %v1139
          %v1141 = vpop.f32.mrf.mxu0
          %v1142 = vpop.f32.mrf.mxu0
          %v1143 = vadd.f32 %v975, %v1142
          %v1144 = vpop.f32.mrf.mxu0
          %1145 = vmatprep.mubr.bf16.mxu0 0
          %1146 = vmatmul.mubr.bf16.gmra.mxu0 %v717
          %v1147 = vpop.f32.mrf.mxu0
          %v1148 = vadd.f32 %v975, %v1147
          %v1149 = vpop.f32.mrf.mxu0
          %v1150 = vpop.f32.mrf.mxu0
          %v1151 = vadd.f32 %v975, %v1150
          %v1152 = vpop.f32.mrf.mxu0
          %1153 = vmatprep.mubr.bf16.mxu0 0
          %1154 = vmatmul.mubr.bf16.gmra.mxu0 %v718
          %v1155 = vpop.f32.mrf.mxu0
          %v1156 = vadd.f32 %v975, %v1155
          %v1157 = vpop.f32.mrf.mxu0
          %v1158 = vpop.f32.mrf.mxu0
          %v1159 = vadd.f32 %v975, %v1158
          %v1160 = vpop.f32.mrf.mxu0
          %1161 = vmatprep.mubr.bf16.mxu0 0
          %1162 = vmatmul.mubr.bf16.gmra.mxu0 %v719
          %v1163 = vpop.f32.mrf.mxu0
          %v1164 = vadd.f32 %v975, %v1163
          %v1165 = vpop.f32.mrf.mxu0
          %v1166 = vpop.f32.mrf.mxu0
          %v1167 = vadd.f32 %v975, %v1166
          %v1168 = vpop.f32.mrf.mxu0
          %1169 = vmatprep.mubr.bf16.mxu0 0
          %1170 = vmatmul.mubr.bf16.gmra.mxu0 %v720
          %v1171 = vpop.f32.mrf.mxu0
          %v1172 = vadd.f32 %v975, %v1171
          %v1173 = vpop.f32.mrf.mxu0
          %v1174 = vpop.f32.mrf.mxu0
          %v1175 = vadd.f32 %v975, %v1174
          %v1176 = vpop.f32.mrf.mxu0
          %1177 = vmatprep.mubr.bf16.mxu0 0
          %1178 = vmatmul.mubr.bf16.gmra.mxu0 %v721
          %v1179 = vpop.f32.mrf.mxu0
          %v1180 = vadd.f32 %v975, %v1179
          %v1181 = vpop.f32.mrf.mxu0
          %v1182 = vpop.f32.mrf.mxu0
          %v1183 = vadd.f32 %v975, %v1182
          %v1184 = vpop.f32.mrf.mxu0
          %1185 = vdwg.mxu0
          %1186 = vadd.xlane.f32.xlu0 %v450
          %v1187 = vpop.xlane.xlu0 %1186
          %1188 = vadd.xlane.f32.xlu0 %v451
          %v1189 = vpop.xlane.xlu0 %1188
          %1190 = vadd.xlane.f32.xlu0 %v452
          %v1191 = vpop.xlane.xlu0 %1190
          %1192 = vadd.xlane.f32.xlu0 %v453
          %v1193 = vpop.xlane.xlu0 %1192
          %1194 = vadd.xlane.f32.xlu0 %v454
          %v1195 = vpop.xlane.xlu0 %1194
          %1196 = vadd.xlane.f32.xlu0 %v455
          %v1197 = vpop.xlane.xlu0 %1196
          %1198 = vadd.xlane.f32.xlu0 %v456
          %v1199 = vpop.xlane.xlu0 %1198
          %1200 = vadd.xlane.f32.xlu0 %v457
          %v1201 = vpop.xlane.xlu0 %1200
          %1202 = vadd.xlane.f32.xlu0 %v458
          %v1203 = vpop.xlane.xlu0 %1202
          %1204 = vadd.xlane.f32.xlu0 %v459
          %v1205 = vpop.xlane.xlu0 %1204
          %1206 = vadd.xlane.f32.xlu0 %v460
          %v1207 = vpop.xlane.xlu0 %1206
          %1208 = vadd.xlane.f32.xlu0 %v461
          %v1209 = vpop.xlane.xlu0 %1208
          %1210 = vadd.xlane.f32.xlu0 %v462
          %v1211 = vpop.xlane.xlu0 %1210
          %1212 = vadd.xlane.f32.xlu0 %v463
          %v1213 = vpop.xlane.xlu0 %1212
          %1214 = vadd.xlane.f32.xlu0 %v464
          %v1215 = vpop.xlane.xlu0 %1214
          %1216 = vadd.xlane.f32.xlu0 %v465
          %v1217 = vpop.xlane.xlu0 %1216
          %1218 = vadd.xlane.f32.xlu0 %v466
          %v1219 = vpop.xlane.xlu0 %1218
          %1220 = vadd.xlane.f32.xlu0 %v467
          %v1221 = vpop.xlane.xlu0 %1220
          %1222 = vadd.xlane.f32.xlu0 %v468
          %v1223 = vpop.xlane.xlu0 %1222
          %1224 = vadd.xlane.f32.xlu0 %v469
          %v1225 = vpop.xlane.xlu0 %1224
          %1226 = vadd.xlane.f32.xlu0 %v470
          %v1227 = vpop.xlane.xlu0 %1226
          %1228 = vadd.xlane.f32.xlu0 %v471
          %v1229 = vpop.xlane.xlu0 %1228
          %1230 = vadd.xlane.f32.xlu0 %v472
          %v1231 = vpop.xlane.xlu0 %1230
          %1232 = vadd.xlane.f32.xlu0 %v473
          %v1233 = vpop.xlane.xlu0 %1232
          %1234 = vadd.xlane.f32.xlu0 %v474
          %v1235 = vpop.xlane.xlu0 %1234
          %1236 = vadd.xlane.f32.xlu0 %v475
          %v1237 = vpop.xlane.xlu0 %1236
          %1238 = vadd.xlane.f32.xlu0 %v476
          %v1239 = vpop.xlane.xlu0 %1238
          %1240 = vadd.xlane.f32.xlu0 %v477
          %v1241 = vpop.xlane.xlu0 %1240
          %1242 = vadd.xlane.f32.xlu0 %v478
          %v1243 = vpop.xlane.xlu0 %1242
          %1244 = vadd.xlane.f32.xlu0 %v479
          %v1245 = vpop.xlane.xlu0 %1244
          %1246 = vadd.xlane.f32.xlu0 %v480
          %v1247 = vpop.xlane.xlu0 %1246
          %1248 = vadd.xlane.f32.xlu0 %v481
          %v1249 = vpop.xlane.xlu0 %1248
          %v1250 = vrcp.pop 128.0
          %v1251 = vmul.f32 %v1187, %v1250
          %v1252 = vmul.f32 %v1189, %v1250
          %v1253 = vmul.f32 %v1191, %v1250
          %v1254 = vmul.f32 %v1193, %v1250
          %v1255 = vmul.f32 %v1195, %v1250
          %v1256 = vmul.f32 %v1197, %v1250
          %v1257 = vmul.f32 %v1199, %v1250
          %v1258 = vmul.f32 %v1201, %v1250
          %v1259 = vmul.f32 %v1203, %v1250
          %v1260 = vmul.f32 %v1205, %v1250
          %v1261 = vmul.f32 %v1207, %v1250
          %v1262 = vmul.f32 %v1209, %v1250
          %v1263 = vmul.f32 %v1211, %v1250
          %v1264 = vmul.f32 %v1213, %v1250
          %v1265 = vmul.f32 %v1215, %v1250
          %v1266 = vmul.f32 %v1217, %v1250
          %v1267 = vmul.f32 %v1219, %v1250
          %v1268 = vmul.f32 %v1221, %v1250
          %v1269 = vmul.f32 %v1223, %v1250
          %v1270 = vmul.f32 %v1225, %v1250
          %v1271 = vmul.f32 %v1227, %v1250
          %v1272 = vmul.f32 %v1229, %v1250
          %v1273 = vmul.f32 %v1231, %v1250
          %v1274 = vmul.f32 %v1233, %v1250
          %v1275 = vmul.f32 %v1235, %v1250
          %v1276 = vmul.f32 %v1237, %v1250
          %v1277 = vmul.f32 %v1239, %v1250
          %v1278 = vmul.f32 %v1241, %v1250
          %v1279 = vmul.f32 %v1243, %v1250
          %v1280 = vmul.f32 %v1245, %v1250
          %v1281 = vmul.f32 %v1247, %v1250
          %v1282 = vmul.f32 %v1249, %v1250
          %v1283 = vsub.f32 %v450, %v1251
          %v1284 = vsub.f32 %v451, %v1252
          %v1285 = vsub.f32 %v452, %v1253
          %v1286 = vsub.f32 %v453, %v1254
          %v1287 = vsub.f32 %v454, %v1255
          %v1288 = vsub.f32 %v455, %v1256
          %v1289 = vsub.f32 %v456, %v1257
          %v1290 = vsub.f32 %v457, %v1258
          %v1291 = vsub.f32 %v458, %v1259
          %v1292 = vsub.f32 %v459, %v1260
          %v1293 = vsub.f32 %v460, %v1261
          %v1294 = vsub.f32 %v461, %v1262
          %v1295 = vsub.f32 %v462, %v1263
          %v1296 = vsub.f32 %v463, %v1264
          %v1297 = vsub.f32 %v464, %v1265
          %v1298 = vsub.f32 %v465, %v1266
          %v1299 = vsub.f32 %v466, %v1267
          %v1300 = vsub.f32 %v467, %v1268
          %v1301 = vsub.f32 %v468, %v1269
          %v1302 = vsub.f32 %v469, %v1270
          %v1303 = vsub.f32 %v470, %v1271
          %v1304 = vsub.f32 %v471, %v1272
          %v1305 = vsub.f32 %v472, %v1273
          %v1306 = vsub.f32 %v473, %v1274
          %v1307 = vsub.f32 %v474, %v1275
          %v1308 = vsub.f32 %v475, %v1276
          %v1309 = vsub.f32 %v476, %v1277
          %v1310 = vsub.f32 %v477, %v1278
          %v1311 = vsub.f32 %v478, %v1279
          %v1312 = vsub.f32 %v479, %v1280
          %v1313 = vsub.f32 %v480, %v1281
          %v1314 = vsub.f32 %v481, %v1282
          %v1315 = vmul.f32 %v1283, %v1283
          %v1316 = vmul.f32 %v1284, %v1284
          %v1317 = vmul.f32 %v1285, %v1285
          %v1318 = vmul.f32 %v1286, %v1286
          %v1319 = vmul.f32 %v1287, %v1287
          %v1320 = vmul.f32 %v1288, %v1288
          %v1321 = vmul.f32 %v1289, %v1289
          %v1322 = vmul.f32 %v1290, %v1290
          %v1323 = vmul.f32 %v1291, %v1291
          %v1324 = vmul.f32 %v1292, %v1292
          %v1325 = vmul.f32 %v1293, %v1293
          %v1326 = vmul.f32 %v1294, %v1294
          %v1327 = vmul.f32 %v1295, %v1295
          %v1328 = vmul.f32 %v1296, %v1296
          %v1329 = vmul.f32 %v1297, %v1297
          %v1330 = vmul.f32 %v1298, %v1298
          %v1331 = vmul.f32 %v1299, %v1299
          %v1332 = vmul.f32 %v1300, %v1300
          %v1333 = vmul.f32 %v1301, %v1301
          %v1334 = vmul.f32 %v1302, %v1302
          %v1335 = vmul.f32 %v1303, %v1303
          %v1336 = vmul.f32 %v1304, %v1304
          %v1337 = vmul.f32 %v1305, %v1305
          %v1338 = vmul.f32 %v1306, %v1306
          %v1339 = vmul.f32 %v1307, %v1307
          %v1340 = vmul.f32 %v1308, %v1308
          %v1341 = vmul.f32 %v1309, %v1309
          %v1342 = vmul.f32 %v1310, %v1310
          %v1343 = vmul.f32 %v1311, %v1311
          %v1344 = vmul.f32 %v1312, %v1312
          %v1345 = vmul.f32 %v1313, %v1313
          %v1346 = vmul.f32 %v1314, %v1314
          %1347 = vadd.xlane.f32.xlu0 %v1315
          %v1348 = vpop.xlane.xlu0 %1347
          %1349 = vadd.xlane.f32.xlu0 %v1316
          %v1350 = vpop.xlane.xlu0 %1349
          %1351 = vadd.xlane.f32.xlu0 %v1317
          %v1352 = vpop.xlane.xlu0 %1351
          %1353 = vadd.xlane.f32.xlu0 %v1318
          %v1354 = vpop.xlane.xlu0 %1353
          %1355 = vadd.xlane.f32.xlu0 %v1319
          %v1356 = vpop.xlane.xlu0 %1355
          %1357 = vadd.xlane.f32.xlu0 %v1320
          %v1358 = vpop.xlane.xlu0 %1357
          %1359 = vadd.xlane.f32.xlu0 %v1321
          %v1360 = vpop.xlane.xlu0 %1359
          %1361 = vadd.xlane.f32.xlu0 %v1322
          %v1362 = vpop.xlane.xlu0 %1361
          %1363 = vadd.xlane.f32.xlu0 %v1323
          %v1364 = vpop.xlane.xlu0 %1363
          %1365 = vadd.xlane.f32.xlu0 %v1324
          %v1366 = vpop.xlane.xlu0 %1365
          %1367 = vadd.xlane.f32.xlu0 %v1325
          %v1368 = vpop.xlane.xlu0 %1367
          %1369 = vadd.xlane.f32.xlu0 %v1326
          %v1370 = vpop.xlane.xlu0 %1369
          %1371 = vadd.xlane.f32.xlu0 %v1327
          %v1372 = vpop.xlane.xlu0 %1371
          %1373 = vadd.xlane.f32.xlu0 %v1328
          %v1374 = vpop.xlane.xlu0 %1373
          %1375 = vadd.xlane.f32.xlu0 %v1329
          %v1376 = vpop.xlane.xlu0 %1375
          %1377 = vadd.xlane.f32.xlu0 %v1330
          %v1378 = vpop.xlane.xlu0 %1377
          %1379 = vadd.xlane.f32.xlu0 %v1331
          %v1380 = vpop.xlane.xlu0 %1379
          %1381 = vadd.xlane.f32.xlu0 %v1332
          %v1382 = vpop.xlane.xlu0 %1381
          %1383 = vadd.xlane.f32.xlu0 %v1333
          %v1384 = vpop.xlane.xlu0 %1383
          %1385 = vadd.xlane.f32.xlu0 %v1334
          %v1386 = vpop.xlane.xlu0 %1385
          %1387 = vadd.xlane.f32.xlu0 %v1335
          %v1388 = vpop.xlane.xlu0 %1387
          %1389 = vadd.xlane.f32.xlu0 %v1336
          %v1390 = vpop.xlane.xlu0 %1389
          %1391 = vadd.xlane.f32.xlu0 %v1337
          %v1392 = vpop.xlane.xlu0 %1391
          %1393 = vadd.xlane.f32.xlu0 %v1338
          %v1394 = vpop.xlane.xlu0 %1393
          %1395 = vadd.xlane.f32.xlu0 %v1339
          %v1396 = vpop.xlane.xlu0 %1395
          %1397 = vadd.xlane.f32.xlu0 %v1340
          %v1398 = vpop.xlane.xlu0 %1397
          %1399 = vadd.xlane.f32.xlu0 %v1341
          %v1400 = vpop.xlane.xlu0 %1399
          %1401 = vadd.xlane.f32.xlu0 %v1342
          %v1402 = vpop.xlane.xlu0 %1401
          %1403 = vadd.xlane.f32.xlu0 %v1343
          %v1404 = vpop.xlane.xlu0 %1403
          %1405 = vadd.xlane.f32.xlu0 %v1344
          %v1406 = vpop.xlane.xlu0 %1405
          %1407 = vadd.xlane.f32.xlu0 %v1345
          %v1408 = vpop.xlane.xlu0 %1407
          %1409 = vadd.xlane.f32.xlu0 %v1346
          %v1410 = vpop.xlane.xlu0 %1409
          %v1411 = vmul.f32 %v1348, %v1250
          %v1412 = vmul.f32 %v1350, %v1250
          %v1413 = vmul.f32 %v1352, %v1250
          %v1414 = vmul.f32 %v1354, %v1250
          %v1415 = vmul.f32 %v1356, %v1250
          %v1416 = vmul.f32 %v1358, %v1250
          %v1417 = vmul.f32 %v1360, %v1250
          %v1418 = vmul.f32 %v1362, %v1250
          %v1419 = vmul.f32 %v1364, %v1250
          %v1420 = vmul.f32 %v1366, %v1250
          %v1421 = vmul.f32 %v1368, %v1250
          %v1422 = vmul.f32 %v1370, %v1250
          %v1423 = vmul.f32 %v1372, %v1250
          %v1424 = vmul.f32 %v1374, %v1250
          %v1425 = vmul.f32 %v1376, %v1250
          %v1426 = vmul.f32 %v1378, %v1250
          %v1427 = vmul.f32 %v1380, %v1250
          %v1428 = vmul.f32 %v1382, %v1250
          %v1429 = vmul.f32 %v1384, %v1250
          %v1430 = vmul.f32 %v1386, %v1250
          %v1431 = vmul.f32 %v1388, %v1250
          %v1432 = vmul.f32 %v1390, %v1250
          %v1433 = vmul.f32 %v1392, %v1250
          %v1434 = vmul.f32 %v1394, %v1250
          %v1435 = vmul.f32 %v1396, %v1250
          %v1436 = vmul.f32 %v1398, %v1250
          %v1437 = vmul.f32 %v1400, %v1250
          %v1438 = vmul.f32 %v1402, %v1250
          %v1439 = vmul.f32 %v1404, %v1250
          %v1440 = vmul.f32 %v1406, %v1250
          %v1441 = vmul.f32 %v1408, %v1250
          %v1442 = vmul.f32 %v1410, %v1250
          %v1443 = vadd.f32 %v1411, 1e-06
          %v1444 = vadd.f32 %v1412, 1e-06
          %v1445 = vadd.f32 %v1413, 1e-06
          %v1446 = vadd.f32 %v1414, 1e-06
          %v1447 = vadd.f32 %v1415, 1e-06
          %v1448 = vadd.f32 %v1416, 1e-06
          %v1449 = vadd.f32 %v1417, 1e-06
          %v1450 = vadd.f32 %v1418, 1e-06
          %v1451 = vadd.f32 %v1419, 1e-06
          %v1452 = vadd.f32 %v1420, 1e-06
          %v1453 = vadd.f32 %v1421, 1e-06
          %v1454 = vadd.f32 %v1422, 1e-06
          %v1455 = vadd.f32 %v1423, 1e-06
          %v1456 = vadd.f32 %v1424, 1e-06
          %v1457 = vadd.f32 %v1425, 1e-06
          %v1458 = vadd.f32 %v1426, 1e-06
          %v1459 = vadd.f32 %v1427, 1e-06
          %v1460 = vadd.f32 %v1428, 1e-06
          %v1461 = vadd.f32 %v1429, 1e-06
          %v1462 = vadd.f32 %v1430, 1e-06
          %v1463 = vadd.f32 %v1431, 1e-06
          %v1464 = vadd.f32 %v1432, 1e-06
          %v1465 = vadd.f32 %v1433, 1e-06
          %v1466 = vadd.f32 %v1434, 1e-06
          %v1467 = vadd.f32 %v1435, 1e-06
          %v1468 = vadd.f32 %v1436, 1e-06
          %v1469 = vadd.f32 %v1437, 1e-06
          %v1470 = vadd.f32 %v1438, 1e-06
          %v1471 = vadd.f32 %v1439, 1e-06
          %v1472 = vadd.f32 %v1440, 1e-06
          %v1473 = vadd.f32 %v1441, 1e-06
          %v1474 = vadd.f32 %v1442, 1e-06
          %v1475 = vrsqrt.pop %v1443
          %v1476 = vrsqrt.pop %v1444
          %v1477 = vrsqrt.pop %v1445
          %v1478 = vrsqrt.pop %v1446
          %v1479 = vrsqrt.pop %v1447
          %v1480 = vrsqrt.pop %v1448
          %v1481 = vrsqrt.pop %v1449
          %v1482 = vrsqrt.pop %v1450
          %v1483 = vrsqrt.pop %v1451
          %v1484 = vrsqrt.pop %v1452
          %v1485 = vrsqrt.pop %v1453
          %v1486 = vrsqrt.pop %v1454
          %v1487 = vrsqrt.pop %v1455
          %v1488 = vrsqrt.pop %v1456
          %v1489 = vrsqrt.pop %v1457
          %v1490 = vrsqrt.pop %v1458
          %v1491 = vrsqrt.pop %v1459
          %v1492 = vrsqrt.pop %v1460
          %v1493 = vrsqrt.pop %v1461
          %v1494 = vrsqrt.pop %v1462
          %v1495 = vrsqrt.pop %v1463
          %v1496 = vrsqrt.pop %v1464
          %v1497 = vrsqrt.pop %v1465
          %v1498 = vrsqrt.pop %v1466
          %v1499 = vrsqrt.pop %v1467
          %v1500 = vrsqrt.pop %v1468
          %v1501 = vrsqrt.pop %v1469
          %v1502 = vrsqrt.pop %v1470
          %v1503 = vrsqrt.pop %v1471
          %v1504 = vrsqrt.pop %v1472
          %v1505 = vrsqrt.pop %v1473
          %v1506 = vrsqrt.pop %v1474
          %v1507 = vmul.f32 %v1283, %v1475
          %v1508 = vmul.f32 %v1284, %v1476
          %v1509 = vmul.f32 %v1285, %v1477
          %v1510 = vmul.f32 %v1286, %v1478
          %v1511 = vmul.f32 %v1287, %v1479
          %v1512 = vmul.f32 %v1288, %v1480
          %v1513 = vmul.f32 %v1289, %v1481
          %v1514 = vmul.f32 %v1290, %v1482
          %v1515 = vmul.f32 %v1291, %v1483
          %v1516 = vmul.f32 %v1292, %v1484
          %v1517 = vmul.f32 %v1293, %v1485
          %v1518 = vmul.f32 %v1294, %v1486
          %v1519 = vmul.f32 %v1295, %v1487
          %v1520 = vmul.f32 %v1296, %v1488
          %v1521 = vmul.f32 %v1297, %v1489
          %v1522 = vmul.f32 %v1298, %v1490
          %v1523 = vmul.f32 %v1299, %v1491
          %v1524 = vmul.f32 %v1300, %v1492
          %v1525 = vmul.f32 %v1301, %v1493
          %v1526 = vmul.f32 %v1302, %v1494
          %v1527 = vmul.f32 %v1303, %v1495
          %v1528 = vmul.f32 %v1304, %v1496
          %v1529 = vmul.f32 %v1305, %v1497
          %v1530 = vmul.f32 %v1306, %v1498
          %v1531 = vmul.f32 %v1307, %v1499
          %v1532 = vmul.f32 %v1308, %v1500
          %v1533 = vmul.f32 %v1309, %v1501
          %v1534 = vmul.f32 %v1310, %v1502
          %v1535 = vmul.f32 %v1311, %v1503
          %v1536 = vmul.f32 %v1312, %v1504
          %v1537 = vmul.f32 %v1313, %v1505
          %v1538 = vmul.f32 %v1314, %v1506
          %v1539 = vadd.f32 %v1060, 1.0
          %v1540 = vadd.f32 %v1063, 1.0
          %v1541 = vadd.f32 %v1068, 1.0
          %v1542 = vadd.f32 %v1071, 1.0
          %v1543 = vadd.f32 %v1076, 1.0
          %v1544 = vadd.f32 %v1079, 1.0
          %v1545 = vadd.f32 %v1084, 1.0
          %v1546 = vadd.f32 %v1087, 1.0
          %v1547 = vadd.f32 %v1092, 1.0
          %v1548 = vadd.f32 %v1095, 1.0
          %v1549 = vadd.f32 %v1100, 1.0
          %v1550 = vadd.f32 %v1103, 1.0
          %v1551 = vadd.f32 %v1108, 1.0
          %v1552 = vadd.f32 %v1111, 1.0
          %v1553 = vadd.f32 %v1116, 1.0
          %v1554 = vadd.f32 %v1119, 1.0
          %v1555 = vadd.f32 %v1124, 1.0
          %v1556 = vadd.f32 %v1127, 1.0
          %v1557 = vadd.f32 %v1132, 1.0
          %v1558 = vadd.f32 %v1135, 1.0
          %v1559 = vadd.f32 %v1140, 1.0
          %v1560 = vadd.f32 %v1143, 1.0
          %v1561 = vadd.f32 %v1148, 1.0
          %v1562 = vadd.f32 %v1151, 1.0
          %v1563 = vadd.f32 %v1156, 1.0
          %v1564 = vadd.f32 %v1159, 1.0
          %v1565 = vadd.f32 %v1164, 1.0
          %v1566 = vadd.f32 %v1167, 1.0
          %v1567 = vadd.f32 %v1172, 1.0
          %v1568 = vadd.f32 %v1175, 1.0
          %v1569 = vadd.f32 %v1180, 1.0
          %v1570 = vadd.f32 %v1183, 1.0
          %v1571 = vmul.f32 %v1507, %v1539
          %v1572 = vmul.f32 %v1508, %v1540
          %v1573 = vmul.f32 %v1509, %v1541
          %v1574 = vmul.f32 %v1510, %v1542
          %v1575 = vmul.f32 %v1511, %v1543
          %v1576 = vmul.f32 %v1512, %v1544
          %v1577 = vmul.f32 %v1513, %v1545
          %v1578 = vmul.f32 %v1514, %v1546
          %v1579 = vmul.f32 %v1515, %v1547
          %v1580 = vmul.f32 %v1516, %v1548
          %v1581 = vmul.f32 %v1517, %v1549
          %v1582 = vmul.f32 %v1518, %v1550
          %v1583 = vmul.f32 %v1519, %v1551
          %v1584 = vmul.f32 %v1520, %v1552
          %v1585 = vmul.f32 %v1521, %v1553
          %v1586 = vmul.f32 %v1522, %v1554
          %v1587 = vmul.f32 %v1523, %v1555
          %v1588 = vmul.f32 %v1524, %v1556
          %v1589 = vmul.f32 %v1525, %v1557
          %v1590 = vmul.f32 %v1526, %v1558
          %v1591 = vmul.f32 %v1527, %v1559
          %v1592 = vmul.f32 %v1528, %v1560
          %v1593 = vmul.f32 %v1529, %v1561
          %v1594 = vmul.f32 %v1530, %v1562
          %v1595 = vmul.f32 %v1531, %v1563
          %v1596 = vmul.f32 %v1532, %v1564
          %v1597 = vmul.f32 %v1533, %v1565
          %v1598 = vmul.f32 %v1534, %v1566
          %v1599 = vmul.f32 %v1535, %v1567
          %v1600 = vmul.f32 %v1536, %v1568
          %v1601 = vmul.f32 %v1537, %v1569
          %v1602 = vmul.f32 %v1538, %v1570
          %v1603 = vadd.f32 %v1571, %v828
          %v1604 = vadd.f32 %v1572, %v831
          %v1605 = vadd.f32 %v1573, %v836
          %v1606 = vadd.f32 %v1574, %v839
          %v1607 = vadd.f32 %v1575, %v844
          %v1608 = vadd.f32 %v1576, %v847
          %v1609 = vadd.f32 %v1577, %v852
          %v1610 = vadd.f32 %v1578, %v855
          %v1611 = vadd.f32 %v1579, %v860
          %v1612 = vadd.f32 %v1580, %v863
          %v1613 = vadd.f32 %v1581, %v868
          %v1614 = vadd.f32 %v1582, %v871
          %v1615 = vadd.f32 %v1583, %v876
          %v1616 = vadd.f32 %v1584, %v879
          %v1617 = vadd.f32 %v1585, %v884
          %v1618 = vadd.f32 %v1586, %v887
          %v1619 = vadd.f32 %v1587, %v892
          %v1620 = vadd.f32 %v1588, %v895
          %v1621 = vadd.f32 %v1589, %v900
          %v1622 = vadd.f32 %v1590, %v903
          %v1623 = vadd.f32 %v1591, %v908
          %v1624 = vadd.f32 %v1592, %v911
          %v1625 = vadd.f32 %v1593, %v916
          %v1626 = vadd.f32 %v1594, %v919
          %v1627 = vadd.f32 %v1595, %v924
          %v1628 = vadd.f32 %v1596, %v927
          %v1629 = vadd.f32 %v1597, %v932
          %v1630 = vadd.f32 %v1598, %v935
          %v1631 = vadd.f32 %v1599, %v940
          %v1632 = vadd.f32 %v1600, %v943
          %v1633 = vadd.f32 %v1601, %v948
          %v1634 = vadd.f32 %v1602, %v951
          %v1635 = vpack.c.bf16 %v1604, %v1603
          %v1636 = vpack.c.bf16 %v1606, %v1605
          %v1637 = vpack.c.bf16 %v1608, %v1607
          %v1638 = vpack.c.bf16 %v1610, %v1609
          %v1639 = vpack.c.bf16 %v1612, %v1611
          %v1640 = vpack.c.bf16 %v1614, %v1613
          %v1641 = vpack.c.bf16 %v1616, %v1615
          %v1642 = vpack.c.bf16 %v1618, %v1617
          %v1643 = vpack.c.bf16 %v1620, %v1619
          %v1644 = vpack.c.bf16 %v1622, %v1621
          %v1645 = vpack.c.bf16 %v1624, %v1623
          %v1646 = vpack.c.bf16 %v1626, %v1625
          %v1647 = vpack.c.bf16 %v1628, %v1627
          %v1648 = vpack.c.bf16 %v1630, %v1629
          %v1649 = vpack.c.bf16 %v1632, %v1631
          %v1650 = vpack.c.bf16 %v1634, %v1633
          %v1667 = vunpack.c.l.b16 %v1635
          %v1668 = vunpack.c.h.b16 %v1635
          %v1669 = vunpack.c.l.b16 %v1636
          %v1670 = vunpack.c.h.b16 %v1636
          %v1671 = vunpack.c.l.b16 %v1637
          %v1672 = vunpack.c.h.b16 %v1637
          %v1673 = vunpack.c.l.b16 %v1638
          %v1674 = vunpack.c.h.b16 %v1638
          %v1675 = vunpack.c.l.b16 %v1639
          %v1676 = vunpack.c.h.b16 %v1639
          %v1677 = vunpack.c.l.b16 %v1640
          %v1678 = vunpack.c.h.b16 %v1640
          %v1679 = vunpack.c.l.b16 %v1641
          %v1680 = vunpack.c.h.b16 %v1641
          %v1681 = vunpack.c.l.b16 %v1642
          %v1682 = vunpack.c.h.b16 %v1642
          %v1683 = vunpack.c.l.b16 %v1643
          %v1684 = vunpack.c.h.b16 %v1643
          %v1685 = vunpack.c.l.b16 %v1644
          %v1686 = vunpack.c.h.b16 %v1644
          %v1687 = vunpack.c.l.b16 %v1645
          %v1688 = vunpack.c.h.b16 %v1645
          %v1689 = vunpack.c.l.b16 %v1646
          %v1690 = vunpack.c.h.b16 %v1646
          %v1691 = vunpack.c.l.b16 %v1647
          %v1692 = vunpack.c.h.b16 %v1647
          %v1693 = vunpack.c.l.b16 %v1648
          %v1694 = vunpack.c.h.b16 %v1648
          %v1695 = vunpack.c.l.b16 %v1649
          %v1696 = vunpack.c.h.b16 %v1649
          %v1697 = vunpack.c.l.b16 %v1650
          %v1698 = vunpack.c.h.b16 %v1650
          %v1699 = vpack.c.b16 %v1667, %v1667
          %v1700 = vpack.c.b16 %v1668, %v1668
          %v1701 = vpack.c.b16 %v1669, %v1669
          %v1702 = vpack.c.b16 %v1670, %v1670
          %v1703 = vpack.c.b16 %v1671, %v1671
          %v1704 = vpack.c.b16 %v1672, %v1672
          %v1705 = vpack.c.b16 %v1673, %v1673
          %v1706 = vpack.c.b16 %v1674, %v1674
          %v1707 = vpack.c.b16 %v1675, %v1675
          %v1708 = vpack.c.b16 %v1676, %v1676
          %v1709 = vpack.c.b16 %v1677, %v1677
          %v1710 = vpack.c.b16 %v1678, %v1678
          %v1711 = vpack.c.b16 %v1679, %v1679
          %v1712 = vpack.c.b16 %v1680, %v1680
          %v1713 = vpack.c.b16 %v1681, %v1681
          %v1714 = vpack.c.b16 %v1682, %v1682
          %v1715 = vpack.c.b16 %v1683, %v1683
          %v1716 = vpack.c.b16 %v1684, %v1684
          %v1717 = vpack.c.b16 %v1685, %v1685
          %v1718 = vpack.c.b16 %v1686, %v1686
          %v1719 = vpack.c.b16 %v1687, %v1687
          %v1720 = vpack.c.b16 %v1688, %v1688
          %v1721 = vpack.c.b16 %v1689, %v1689
          %v1722 = vpack.c.b16 %v1690, %v1690
          %v1723 = vpack.c.b16 %v1691, %v1691
          %v1724 = vpack.c.b16 %v1692, %v1692
          %v1725 = vpack.c.b16 %v1693, %v1693
          %v1726 = vpack.c.b16 %v1694, %v1694
          %v1727 = vpack.c.b16 %v1695, %v1695
          %v1728 = vpack.c.b16 %v1696, %v1696
          %v1729 = vpack.c.b16 %v1697, %v1697
          %v1730 = vpack.c.b16 %v1698, %v1698
          %1763 = vst [vmem:[#allocation2] sm:$0xf] %v1699
          %1764 = vst [vmem:[#allocation2 + $0x4] sm:$0xf] %v1700
          %1765 = vst [vmem:[#allocation2 + $0x8] sm:$0xf] %v1701
          %1766 = vst [vmem:[#allocation2 + $0xc] sm:$0xf] %v1702
          %1767 = vst [vmem:[#allocation2 + $0x10] sm:$0xf] %v1703
          %1768 = vst [vmem:[#allocation2 + $0x14] sm:$0xf] %v1704
          %1769 = vst [vmem:[#allocation2 + $0x18] sm:$0xf] %v1705
          %1770 = vst [vmem:[#allocation2 + $0x1c] sm:$0xf] %v1706
          %1771 = vst [vmem:[#allocation2 + $0x20] sm:$0xf] %v1707
          %1772 = vst [vmem:[#allocation2 + $0x24] sm:$0xf] %v1708
          %1773 = vst [vmem:[#allocation2 + $0x28] sm:$0xf] %v1709
          %1774 = vst [vmem:[#allocation2 + $0x2c] sm:$0xf] %v1710
          %1775 = vst [vmem:[#allocation2 + $0x30] sm:$0xf] %v1711
          %1776 = vst [vmem:[#allocation2 + $0x34] sm:$0xf] %v1712
          %1777 = vst [vmem:[#allocation2 + $0x38] sm:$0xf] %v1713
          %1778 = vst [vmem:[#allocation2 + $0x3c] sm:$0xf] %v1714
          %1779 = vst [vmem:[#allocation2 + $0x40] sm:$0xf] %v1715
          %1780 = vst [vmem:[#allocation2 + $0x44] sm:$0xf] %v1716
          %1781 = vst [vmem:[#allocation2 + $0x48] sm:$0xf] %v1717
          %1782 = vst [vmem:[#allocation2 + $0x4c] sm:$0xf] %v1718
          %1783 = vst [vmem:[#allocation2 + $0x50] sm:$0xf] %v1719
          %1784 = vst [vmem:[#allocation2 + $0x54] sm:$0xf] %v1720
          %1785 = vst [vmem:[#allocation2 + $0x58] sm:$0xf] %v1721
          %1786 = vst [vmem:[#allocation2 + $0x5c] sm:$0xf] %v1722
          %1787 = vst [vmem:[#allocation2 + $0x60] sm:$0xf] %v1723
          %1788 = vst [vmem:[#allocation2 + $0x64] sm:$0xf] %v1724
          %1789 = vst [vmem:[#allocation2 + $0x68] sm:$0xf] %v1725
          %1790 = vst [vmem:[#allocation2 + $0x6c] sm:$0xf] %v1726
          %1791 = vst [vmem:[#allocation2 + $0x70] sm:$0xf] %v1727
          %1792 = vst [vmem:[#allocation2 + $0x74] sm:$0xf] %v1728
          %1793 = vst [vmem:[#allocation2 + $0x78] sm:$0xf] %v1729
          %1794 = vst [vmem:[#allocation2 + $0x7c] sm:$0xf] %v1730
        $region76: #{tpu_custom_call.1} parent=51 // pred_fallthru
          _
        %v1795 = vld [vmem:[#allocation2] sm:$0xf]
        %v1796 = vld [vmem:[#allocation2 + $0x4] sm:$0xf]
        %v1797 = vld [vmem:[#allocation2 + $0x8] sm:$0xf]
        %v1798 = vld [vmem:[#allocation2 + $0xc] sm:$0xf]
        %v1799 = vld [vmem:[#allocation2 + $0x10] sm:$0xf]
        %v1800 = vld [vmem:[#allocation2 + $0x14] sm:$0xf]
        %v1801 = vld [vmem:[#allocation2 + $0x18] sm:$0xf]
        %v1802 = vld [vmem:[#allocation2 + $0x1c] sm:$0xf]
        %v1803 = vld [vmem:[#allocation2 + $0x20] sm:$0xf]
        %v1804 = vld [vmem:[#allocation2 + $0x24] sm:$0xf]
        %v1805 = vld [vmem:[#allocation2 + $0x28] sm:$0xf]
        %v1806 = vld [vmem:[#allocation2 + $0x2c] sm:$0xf]
        %v1807 = vld [vmem:[#allocation2 + $0x30] sm:$0xf]
        %v1808 = vld [vmem:[#allocation2 + $0x34] sm:$0xf]
        %v1809 = vld [vmem:[#allocation2 + $0x38] sm:$0xf]
        %v1810 = vld [vmem:[#allocation2 + $0x3c] sm:$0xf]
        %v1811 = vld [vmem:[#allocation2 + $0x40] sm:$0xf]
        %v1812 = vld [vmem:[#allocation2 + $0x44] sm:$0xf]
        %v1813 = vld [vmem:[#allocation2 + $0x48] sm:$0xf]
        %v1814 = vld [vmem:[#allocation2 + $0x4c] sm:$0xf]
        %v1815 = vld [vmem:[#allocation2 + $0x50] sm:$0xf]
        %v1816 = vld [vmem:[#allocation2 + $0x54] sm:$0xf]
        %v1817 = vld [vmem:[#allocation2 + $0x58] sm:$0xf]
        %v1818 = vld [vmem:[#allocation2 + $0x5c] sm:$0xf]
        %v1819 = vld [vmem:[#allocation2 + $0x60] sm:$0xf]
        %v1820 = vld [vmem:[#allocation2 + $0x64] sm:$0xf]
        %v1821 = vld [vmem:[#allocation2 + $0x68] sm:$0xf]
        %v1822 = vld [vmem:[#allocation2 + $0x6c] sm:$0xf]
        %v1823 = vld [vmem:[#allocation2 + $0x70] sm:$0xf]
        %v1824 = vld [vmem:[#allocation2 + $0x74] sm:$0xf]
        %v1825 = vld [vmem:[#allocation2 + $0x78] sm:$0xf]
        %v1826 = vld [vmem:[#allocation2 + $0x7c] sm:$0xf]
        %v1827 = vld [vmem:[#allocation11] sm:$0xf]
        %v1828 = vld [vmem:[#allocation11 + $0x4] sm:$0xf]
        %v1829 = vld [vmem:[#allocation11 + $0x8] sm:$0xf]
        %v1830 = vld [vmem:[#allocation11 + $0xc] sm:$0xf]
        %v1831 = vld [vmem:[#allocation11 + $0x10] sm:$0xf]
        %v1832 = vld [vmem:[#allocation11 + $0x14] sm:$0xf]
        %v1833 = vld [vmem:[#allocation11 + $0x18] sm:$0xf]
        %v1834 = vld [vmem:[#allocation11 + $0x1c] sm:$0xf]
        %v1835 = vld [vmem:[#allocation11 + $0x20] sm:$0xf]
        %v1836 = vld [vmem:[#allocation11 + $0x24] sm:$0xf]
        %v1837 = vld [vmem:[#allocation11 + $0x28] sm:$0xf]
        %v1838 = vld [vmem:[#allocation11 + $0x2c] sm:$0xf]
        %v1839 = vld [vmem:[#allocation11 + $0x30] sm:$0xf]
        %v1840 = vld [vmem:[#allocation11 + $0x34] sm:$0xf]
        %v1841 = vld [vmem:[#allocation11 + $0x38] sm:$0xf]
        %v1842 = vld [vmem:[#allocation11 + $0x3c] sm:$0xf]
        %v1843 = vld [vmem:[%s443] sm:$0x1]
        %v1845 = vlaneseq
        %v1846 = vshrl.u32 %v1845, 7
        %v1847 = vsub.s32 0, %v1846
        %v1848 = vrot.slane %v1843, %v1847
        %v1882 = vunpack.c.l.b16 %v1795
        %v1883 = vunpack.c.l.b16 %v1796
        %v1884 = vunpack.c.l.b16 %v1797
        %v1885 = vunpack.c.l.b16 %v1798
        %v1886 = vunpack.c.l.b16 %v1799
        %v1887 = vunpack.c.l.b16 %v1800
        %v1888 = vunpack.c.l.b16 %v1801
        %v1889 = vunpack.c.l.b16 %v1802
        %v1890 = vunpack.c.l.b16 %v1803
        %v1891 = vunpack.c.l.b16 %v1804
        %v1892 = vunpack.c.l.b16 %v1805
        %v1893 = vunpack.c.l.b16 %v1806
        %v1894 = vunpack.c.l.b16 %v1807
        %v1895 = vunpack.c.l.b16 %v1808
        %v1896 = vunpack.c.l.b16 %v1809
        %v1897 = vunpack.c.l.b16 %v1810
        %v1898 = vunpack.c.l.b16 %v1811
        %v1899 = vunpack.c.l.b16 %v1812
        %v1900 = vunpack.c.l.b16 %v1813
        %v1901 = vunpack.c.l.b16 %v1814
        %v1902 = vunpack.c.l.b16 %v1815
        %v1903 = vunpack.c.l.b16 %v1816
        %v1904 = vunpack.c.l.b16 %v1817
        %v1905 = vunpack.c.l.b16 %v1818
        %v1906 = vunpack.c.l.b16 %v1819
        %v1907 = vunpack.c.l.b16 %v1820
        %v1908 = vunpack.c.l.b16 %v1821
        %v1909 = vunpack.c.l.b16 %v1822
        %v1910 = vunpack.c.l.b16 %v1823
        %v1911 = vunpack.c.l.b16 %v1824
        %v1912 = vunpack.c.l.b16 %v1825
        %v1913 = vunpack.c.l.b16 %v1826
        %v1914 = vpack.c.b16 %v1883, %v1882
        %v1915 = vpack.c.b16 %v1885, %v1884
        %v1916 = vpack.c.b16 %v1887, %v1886
        %v1917 = vpack.c.b16 %v1889, %v1888
        %v1918 = vpack.c.b16 %v1891, %v1890
        %v1919 = vpack.c.b16 %v1893, %v1892
        %v1920 = vpack.c.b16 %v1895, %v1894
        %v1921 = vpack.c.b16 %v1897, %v1896
        %v1922 = vpack.c.b16 %v1899, %v1898
        %v1923 = vpack.c.b16 %v1901, %v1900
        %v1924 = vpack.c.b16 %v1903, %v1902
        %v1925 = vpack.c.b16 %v1905, %v1904
        %v1926 = vpack.c.b16 %v1907, %v1906
        %v1927 = vpack.c.b16 %v1909, %v1908
        %v1928 = vpack.c.b16 %v1911, %v1910
        %v1929 = vpack.c.b16 %v1913, %v1912
        %v1962 = vunpack.c.l.b16 %v1827
        %v1963 = vunpack.c.l.b16 %v1828
        %v1964 = vunpack.c.l.b16 %v1829
        %v1965 = vunpack.c.l.b16 %v1830
        %v1966 = vunpack.c.l.b16 %v1831
        %v1967 = vunpack.c.l.b16 %v1832
        %v1968 = vunpack.c.l.b16 %v1833
        %v1969 = vunpack.c.l.b16 %v1834
        %v1970 = vunpack.c.l.b16 %v1835
        %v1971 = vunpack.c.l.b16 %v1836
        %v1972 = vunpack.c.l.b16 %v1837
        %v1973 = vunpack.c.l.b16 %v1838
        %v1974 = vunpack.c.l.b16 %v1839
        %v1975 = vunpack.c.l.b16 %v1840
        %v1976 = vunpack.c.l.b16 %v1841
        %v1977 = vunpack.c.l.b16 %v1842
        %v1978 = vpack.c.b16 %v1963, %v1962
        %v1979 = vpack.c.b16 %v1965, %v1964
        %v1980 = vpack.c.b16 %v1967, %v1966
        %v1981 = vpack.c.b16 %v1969, %v1968
        %v1982 = vpack.c.b16 %v1971, %v1970
        %v1983 = vpack.c.b16 %v1973, %v1972
        %v1984 = vpack.c.b16 %v1975, %v1974
        %v1985 = vpack.c.b16 %v1977, %v1976
        %1994 = vmatprep.subr.bf16.mxu0 0
        %1995 = vmatpush1.bf16.msra.mxu0 %v1985
        %1996 = vmatprep.subr.bf16.mxu0 0
        %1997 = vmatpush1.bf16.msra.mxu0 %v1984
        %1998 = vmatprep.subr.bf16.mxu0 0
        %1999 = vmatpush1.bf16.msra.mxu0 %v1983
        %2000 = vmatprep.subr.bf16.mxu0 0
        %2001 = vmatpush1.bf16.msra.mxu0 %v1982
        %2002 = vmatprep.subr.bf16.mxu0 0
        %2003 = vmatpush1.bf16.msra.mxu0 %v1981
        %2004 = vmatprep.subr.bf16.mxu0 0
        %2005 = vmatpush1.bf16.msra.mxu0 %v1980
        %2006 = vmatprep.subr.bf16.mxu0 0
        %2007 = vmatpush1.bf16.msra.mxu0 %v1979
        %2008 = vmatprep.subr.bf16.mxu0 0
        %2009 = vmatpush1.bf16.msra.mxu0 %v1978
        %2010 = vmatprep.subr.bf16.mxu0 0
        %2011 = vmatpush2.bf16.msra.mxu0 0
        %2012 = vmatprep.subr.bf16.mxu0 0
        %2013 = vmatpush2.bf16.msra.mxu0 0
        %2014 = vmatprep.subr.bf16.mxu0 0
        %2015 = vmatpush2.bf16.msra.mxu0 0
        %2016 = vmatprep.subr.bf16.mxu0 0
        %2017 = vmatpush2.bf16.msra.mxu0 0
        %2018 = vmatprep.subr.bf16.mxu0 0
        %2019 = vmatpush2.bf16.msra.mxu0 0
        %2020 = vmatprep.subr.bf16.mxu0 0
        %2021 = vmatpush2.bf16.msra.mxu0 0
        %2022 = vmatprep.subr.bf16.mxu0 0
        %2023 = vmatpush2.bf16.msra.mxu0 0
        %2024 = vmatprep.subr.bf16.mxu0 0
        %2025 = vmatpush2.bf16.msra.mxu0 0
        %2026 = vmatprep.mubr.bf16.mxu0 0
        %2027 = vmatmul.mubr.bf16.gmra.mxu0 %v1914
        %v2028 = vpop.f32.mrf.mxu0
        %v2029 = vadd.f32 %v1848, %v2028
        %v2030 = vpop.f32.mrf.mxu0
        %v2031 = vpop.f32.mrf.mxu0
        %v2032 = vadd.f32 %v1848, %v2031
        %v2033 = vpop.f32.mrf.mxu0
        %2034 = vmatprep.mubr.bf16.mxu0 0
        %2035 = vmatmul.mubr.bf16.gmra.mxu0 %v1915
        %v2036 = vpop.f32.mrf.mxu0
        %v2037 = vadd.f32 %v1848, %v2036
        %v2038 = vpop.f32.mrf.mxu0
        %v2039 = vpop.f32.mrf.mxu0
        %v2040 = vadd.f32 %v1848, %v2039
        %v2041 = vpop.f32.mrf.mxu0
        %2042 = vmatprep.mubr.bf16.mxu0 0
        %2043 = vmatmul.mubr.bf16.gmra.mxu0 %v1916
        %v2044 = vpop.f32.mrf.mxu0
        %v2045 = vadd.f32 %v1848, %v2044
        %v2046 = vpop.f32.mrf.mxu0
        %v2047 = vpop.f32.mrf.mxu0
        %v2048 = vadd.f32 %v1848, %v2047
        %v2049 = vpop.f32.mrf.mxu0
        %2050 = vmatprep.mubr.bf16.mxu0 0
        %2051 = vmatmul.mubr.bf16.gmra.mxu0 %v1917
        %v2052 = vpop.f32.mrf.mxu0
        %v2053 = vadd.f32 %v1848, %v2052
        %v2054 = vpop.f32.mrf.mxu0
        %v2055 = vpop.f32.mrf.mxu0
        %v2056 = vadd.f32 %v1848, %v2055
        %v2057 = vpop.f32.mrf.mxu0
        %2058 = vmatprep.mubr.bf16.mxu0 0
        %2059 = vmatmul.mubr.bf16.gmra.mxu0 %v1918
        %v2060 = vpop.f32.mrf.mxu0
        %v2061 = vadd.f32 %v1848, %v2060
        %v2062 = vpop.f32.mrf.mxu0
        %v2063 = vpop.f32.mrf.mxu0
        %v2064 = vadd.f32 %v1848, %v2063
        %v2065 = vpop.f32.mrf.mxu0
        %2066 = vmatprep.mubr.bf16.mxu0 0
        %2067 = vmatmul.mubr.bf16.gmra.mxu0 %v1919
        %v2068 = vpop.f32.mrf.mxu0
        %v2069 = vadd.f32 %v1848, %v2068
        %v2070 = vpop.f32.mrf.mxu0
        %v2071 = vpop.f32.mrf.mxu0
        %v2072 = vadd.f32 %v1848, %v2071
        %v2073 = vpop.f32.mrf.mxu0
        %2074 = vmatprep.mubr.bf16.mxu0 0
        %2075 = vmatmul.mubr.bf16.gmra.mxu0 %v1920
        %v2076 = vpop.f32.mrf.mxu0
        %v2077 = vadd.f32 %v1848, %v2076
        %v2078 = vpop.f32.mrf.mxu0
        %v2079 = vpop.f32.mrf.mxu0
        %v2080 = vadd.f32 %v1848, %v2079
        %v2081 = vpop.f32.mrf.mxu0
        %2082 = vmatprep.mubr.bf16.mxu0 0
        %2083 = vmatmul.mubr.bf16.gmra.mxu0 %v1921
        %v2084 = vpop.f32.mrf.mxu0
        %v2085 = vadd.f32 %v1848, %v2084
        %v2086 = vpop.f32.mrf.mxu0
        %v2087 = vpop.f32.mrf.mxu0
        %v2088 = vadd.f32 %v1848, %v2087
        %v2089 = vpop.f32.mrf.mxu0
        %2090 = vmatprep.mubr.bf16.mxu0 0
        %2091 = vmatmul.mubr.bf16.gmra.mxu0 %v1922
        %v2092 = vpop.f32.mrf.mxu0
        %v2093 = vadd.f32 %v1848, %v2092
        %v2094 = vpop.f32.mrf.mxu0
        %v2095 = vpop.f32.mrf.mxu0
        %v2096 = vadd.f32 %v1848, %v2095
        %v2097 = vpop.f32.mrf.mxu0
        %2098 = vmatprep.mubr.bf16.mxu0 0
        %2099 = vmatmul.mubr.bf16.gmra.mxu0 %v1923
        %v2100 = vpop.f32.mrf.mxu0
        %v2101 = vadd.f32 %v1848, %v2100
        %v2102 = vpop.f32.mrf.mxu0
        %v2103 = vpop.f32.mrf.mxu0
        %v2104 = vadd.f32 %v1848, %v2103
        %v2105 = vpop.f32.mrf.mxu0
        %2106 = vmatprep.mubr.bf16.mxu0 0
        %2107 = vmatmul.mubr.bf16.gmra.mxu0 %v1924
        %v2108 = vpop.f32.mrf.mxu0
        %v2109 = vadd.f32 %v1848, %v2108
        %v2110 = vpop.f32.mrf.mxu0
        %v2111 = vpop.f32.mrf.mxu0
        %v2112 = vadd.f32 %v1848, %v2111
        %v2113 = vpop.f32.mrf.mxu0
        %2114 = vmatprep.mubr.bf16.mxu0 0
        %2115 = vmatmul.mubr.bf16.gmra.mxu0 %v1925
        %v2116 = vpop.f32.mrf.mxu0
        %v2117 = vadd.f32 %v1848, %v2116
        %v2118 = vpop.f32.mrf.mxu0
        %v2119 = vpop.f32.mrf.mxu0
        %v2120 = vadd.f32 %v1848, %v2119
        %v2121 = vpop.f32.mrf.mxu0
        %2122 = vmatprep.mubr.bf16.mxu0 0
        %2123 = vmatmul.mubr.bf16.gmra.mxu0 %v1926
        %v2124 = vpop.f32.mrf.mxu0
        %v2125 = vadd.f32 %v1848, %v2124
        %v2126 = vpop.f32.mrf.mxu0
        %v2127 = vpop.f32.mrf.mxu0
        %v2128 = vadd.f32 %v1848, %v2127
        %v2129 = vpop.f32.mrf.mxu0
        %2130 = vmatprep.mubr.bf16.mxu0 0
        %2131 = vmatmul.mubr.bf16.gmra.mxu0 %v1927
        %v2132 = vpop.f32.mrf.mxu0
        %v2133 = vadd.f32 %v1848, %v2132
        %v2134 = vpop.f32.mrf.mxu0
        %v2135 = vpop.f32.mrf.mxu0
        %v2136 = vadd.f32 %v1848, %v2135
        %v2137 = vpop.f32.mrf.mxu0
        %2138 = vmatprep.mubr.bf16.mxu0 0
        %2139 = vmatmul.mubr.bf16.gmra.mxu0 %v1928
        %v2140 = vpop.f32.mrf.mxu0
        %v2141 = vadd.f32 %v1848, %v2140
        %v2142 = vpop.f32.mrf.mxu0
        %v2143 = vpop.f32.mrf.mxu0
        %v2144 = vadd.f32 %v1848, %v2143
        %v2145 = vpop.f32.mrf.mxu0
        %2146 = vmatprep.mubr.bf16.mxu0 0
        %2147 = vmatmul.mubr.bf16.gmra.mxu0 %v1929
        %v2148 = vpop.f32.mrf.mxu0
        %v2149 = vadd.f32 %v1848, %v2148
        %v2150 = vpop.f32.mrf.mxu0
        %v2151 = vpop.f32.mrf.mxu0
        %v2152 = vadd.f32 %v1848, %v2151
        %v2153 = vpop.f32.mrf.mxu0
        %2154 = vdwg.mxu0
        %2155 = vst [vmem:[%s438] sm:$0xff] %v2029
        %2156 = vst [vmem:[%s438 + $0x8] sm:$0xff] %v2032
        %2157 = vst [vmem:[%s438 + $0x10] sm:$0xff] %v2037
        %2158 = vst [vmem:[%s438 + $0x18] sm:$0xff] %v2040
        %2159 = vst [vmem:[%s438 + $0x20] sm:$0xff] %v2045
        %2160 = vst [vmem:[%s438 + $0x28] sm:$0xff] %v2048
        %2161 = vst [vmem:[%s438 + $0x30] sm:$0xff] %v2053
        %2162 = vst [vmem:[%s438 + $0x38] sm:$0xff] %v2056
        %2163 = vst [vmem:[%s438 + $0x40] sm:$0xff] %v2061
        %2164 = vst [vmem:[%s438 + $0x48] sm:$0xff] %v2064
        %2165 = vst [vmem:[%s438 + $0x50] sm:$0xff] %v2069
        %2166 = vst [vmem:[%s438 + $0x58] sm:$0xff] %v2072
        %2167 = vst [vmem:[%s438 + $0x60] sm:$0xff] %v2077
        %2168 = vst [vmem:[%s438 + $0x68] sm:$0xff] %v2080
        %2169 = vst [vmem:[%s438 + $0x70] sm:$0xff] %v2085
        %2170 = vst [vmem:[%s438 + $0x78] sm:$0xff] %v2088
        %2171 = vst [vmem:[%s438 + $0x80] sm:$0xff] %v2093
        %2172 = vst [vmem:[%s438 + $0x88] sm:$0xff] %v2096
        %2173 = vst [vmem:[%s438 + $0x90] sm:$0xff] %v2101
        %2174 = vst [vmem:[%s438 + $0x98] sm:$0xff] %v2104
        %2175 = vst [vmem:[%s438 + $0xa0] sm:$0xff] %v2109
        %2176 = vst [vmem:[%s438 + $0xa8] sm:$0xff] %v2112
        %2177 = vst [vmem:[%s438 + $0xb0] sm:$0xff] %v2117
        %2178 = vst [vmem:[%s438 + $0xb8] sm:$0xff] %v2120
        %2179 = vst [vmem:[%s438 + $0xc0] sm:$0xff] %v2125
        %2180 = vst [vmem:[%s438 + $0xc8] sm:$0xff] %v2128
        %2181 = vst [vmem:[%s438 + $0xd0] sm:$0xff] %v2133
        %2182 = vst [vmem:[%s438 + $0xd8] sm:$0xff] %v2136
        %2183 = vst [vmem:[%s438 + $0xe0] sm:$0xff] %v2141
        %2184 = vst [vmem:[%s438 + $0xe8] sm:$0xff] %v2144
        %2185 = vst [vmem:[%s438 + $0xf0] sm:$0xff] %v2149
        %2186 = vst [vmem:[%s438 + $0xf8] sm:$0xff] %v2152
        %s2187 = sand.u32 %s239, 1
        %s2188 = scalar_lea.sflag [#allocation5], %s2187
        %s2189 = sand.u32 %s239, 1
        %s2190 = smul.addr %s2189, 256
        %s2191 = scalar_lea.vmem [#allocation12], %s2190
        // Predicated region
        $region77: #{tpu_custom_call.1} parent=51 // pred_check
          %p2192 = pneg %p249
        $region78: #{tpu_custom_call.1} parent=51 // pred_check_branch
          %2194 = sbr.rel (%p2192) target = $region80
        $region79: #{tpu_custom_call.1} parent=51 // pred_region
          %s2195 = smul.u32 32, %s33
          %s2197 = ssub.s32 4096, 4096
          %2198 = vsyncadd %s2188, %s2197
          %s2199 = sadd.s32 %s34, %s2195
          %s2200 = smul.addr %s2199, 128
          %s2201 = scalar_lea.hbm %s8, %s2200
          %s2202 = sshll.u32 %s2191, 4
          %s2203 = int_to_ptr.vmem [resolvable:$true] %s2202
          %2208 = dma.vmem_to_hbm [thread:$0]  %s2203, 4096, %s2201, %s2188, 128, 128, 8
        $region80: #{tpu_custom_call.1} parent=51 // pred_fallthru
          _
      $region52: #{tpu_custom_call.1} parent=5 // pred_fallthru
        _
      %p2209 = scmp.le.s32.totalorder 2, %s24
      // Predicated region
      $region81: #{tpu_custom_call.1} parent=5 // pred_check
        %p2210 = pneg %p2209
      $region82: #{tpu_custom_call.1} parent=5 // pred_check_branch
        %2212 = sbr.rel (%p2210) target = $region84
      $region83: #{tpu_custom_call.1} parent=5 // pred_region
        %s2213 = ssub.s32 %s24, 2
        // Predicated region
        $region85: #{tpu_custom_call.1} parent=83 // pred_check
          %p2214 = pneg %p255
        $region86: #{tpu_custom_call.1} parent=83 // pred_check_branch
          %2216 = sbr.rel (%p2214) target = $region88
        $region87: #{tpu_custom_call.1} parent=83 // pred_region
          %s2217 = sand.u32 %s240, 1
          %s2218 = scalar_lea.sflag [#allocation5], %s2217
          %s2219 = sand.u32 %s240, 1
          %s2220 = smul.addr %s2219, 256
          %s2221 = scalar_lea.vmem [#allocation12], %s2220
          %2222 = dma.done %s2218, 4096
        $region88: #{tpu_custom_call.1} parent=83 // pred_fallthru
          _
      $region84: #{tpu_custom_call.1} parent=5 // pred_fallthru
        _
    $region6: #{tpu_custom_call.1} parent=1 // loop_footer
      %s28 = sadd.s32 1, %s24
    $region7: #{tpu_custom_call.1} parent=1 // loop_footer_branch
      %23 = sbr.rel target = $region3
    $region8: #{tpu_custom_call.1} parent=1 // loop_exit
      _
    %2223 = vsyncpa [#allocation4], 1
    %s2224 = scalar_lea.sflag [#allocation4], 1
    %2225 = vsyncpa %s2224, 1
    %2226 = vsyncpa [#allocation7], 1
    %s2227 = scalar_lea.sflag [#allocation7], 1
    %2228 = vsyncpa %s2227, 1
    %2229 = vsyncpa [#allocation10], 1
    %2230 = vsyncpa [#allocation5], 1
    %s2231 = scalar_lea.sflag [#allocation5], 1
    %2232 = vsyncpa %s2231, 1

</llo_original>
